<compile_context>
chip_gen: v5e
topology: v5e:2x2
jax: 0.10.0
libtpu: 0.0.40
codegen_flags: <defaults>
</compile_context>

<pallas_src>
import functools
import math

import jax
import jax.numpy as jnp
import numpy as np
from jax.experimental import pallas as pl
from jax.experimental.pallas import tpu as pltpu

_LANE = 128
_SUBLANE = 8


def _round_up(x, m):
    return ((x + m - 1) // m) * m


def _textcnn_kernel(emb_ref, wall_ref, cb_ref, fcw_ref, fcb_ref, o_ref,
                    *, filter_sizes, group_width):
    """Fused conv (all filter sizes) + time max-pool + bias/ReLU + FC.

    emb_ref:  (TB, L, D)                 bf16 embedding tile
    wall_ref: (D, TNF_pad)               all conv taps, grouped (filter, tap),
                                         each tap padded to `group_width` lanes
    cb_ref:   (1, len(Ks)*group_width)   conv biases (f32, zero in pad lanes)
    fcw_ref:  (len(Ks)*group_width, C_pad) FC weight (bf16, zero pad rows/lanes)
    fcb_ref:  (1, C_pad)                 FC bias (f32)
    o_ref:    (TB, C_pad)                f32 logits tile (lane-dense, 128-wide)
    """
    tb, seq_len, d = emb_ref.shape
    gw = group_width

    # Single wide MXU matmul: every time step through every conv tap at once.
    # (Per-filter-group matmuls would cut the live `p` slab ~3x but cost extra
    # MXU column passes; VMEM pressure is instead handled by the VMEM-aware
    # batch-tile sizing in the wrapper.)
    x = emb_ref[...].reshape(tb * seq_len, d)
    p = jnp.dot(x, wall_ref[...], preferred_element_type=jnp.float32)
    p = p.reshape(tb, seq_len, -1)                 # (TB, L, TNF_pad) f32

    # Shifted adds (VPU) + max over time (XLU) per filter size.
    # TODO(synk): the sublane-offset slices p[:, i:i+l_out, :] could be moved
    # onto the XLU rotate slot via pltpu.roll(..., axis=1) + a time mask.
    pooled = []
    col = 0
    for k in filter_sizes:
        l_out = seq_len - k + 1
        acc = p[:, 0:l_out, col:col + gw]
        for i in range(1, k):
            acc = acc + p[:, i:i + l_out, col + i * gw:col + (i + 1) * gw]
        pooled.append(jnp.max(acc, axis=1))        # (TB, gw)
        col += k * gw
    feats = jnp.concatenate(pooled, axis=1)        # (TB, len(Ks)*gw) f32

    # Bias + ReLU after the max-pool (both monotone per filter channel =>
    # identical to PyTorch's relu(conv(x)) followed by max_pool1d).
    feats = jnp.maximum(feats + cb_ref[...], 0.0)

    # TODO(synk): nn.Dropout is identity in eval/inference mode.
    o_ref[...] = (
        jnp.dot(feats.astype(fcw_ref.dtype), fcw_ref[...],
                preferred_element_type=jnp.float32)
        + fcb_ref[...]
    )


def build_fused_params(embedding, conv_w_pt, conv_b, fc_w_pt, fc_b,
                       filter_sizes, num_filters, num_classes,
                       mxu_dtype=jnp.bfloat16):
    """Re-lay PyTorch-shaped weights into the fused kernel layout (bf16 MXU)."""
    nf = num_filters
    nks = len(filter_sizes)
    # Lane-align each tap group only when the padding overhead is < 2x.
    nf_pad = _round_up(nf, _LANE) if _round_up(nf, _LANE) <= 2 * nf else nf

    taps = []
    for j, k in enumerate(filter_sizes):
        w = conv_w_pt[j][:, 0]                               # (NF, k, D)
        for i in range(k):
            t = jnp.transpose(w[:, i, :])                    # (D, NF)
            taps.append(jnp.pad(t, ((0, 0), (0, nf_pad - nf))))
    w_all = jnp.concatenate(taps, axis=1)                    # (D, sum(Ks)*nf_pad)
    tnf_pad = _round_up(w_all.shape[1], _LANE)
    w_all = jnp.pad(w_all, ((0, 0), (0, tnf_pad - w_all.shape[1])))
    w_all = w_all.astype(mxu_dtype)

    conv_b_all = jnp.concatenate(
        [jnp.pad(b, (0, nf_pad - nf)) for b in conv_b], axis=0)
    conv_b_all = conv_b_all.reshape(1, nks * nf_pad).astype(jnp.float32)

    c_pad = _round_up(max(num_classes, _LANE), _LANE)
    fc_w = jnp.transpose(fc_w_pt).reshape(nks, nf, num_classes)
    fc_w = jnp.pad(fc_w, ((0, 0), (0, nf_pad - nf), (0, c_pad - num_classes)))
    fc_w_pad = fc_w.reshape(nks * nf_pad, c_pad).astype(mxu_dtype)
    fc_b_pad = jnp.pad(fc_b, (0, c_pad - num_classes)).reshape(1, c_pad)
    fc_b_pad = fc_b_pad.astype(jnp.float32)

    return dict(
        embedding=embedding.astype(mxu_dtype),   # bf16 table -> bf16 gather
        w_all=w_all, conv_b_all=conv_b_all,
        fc_w_pad=fc_w_pad, fc_b_pad=fc_b_pad,
        filter_sizes=tuple(filter_sizes), num_filters=nf, nf_pad=nf_pad,
        num_classes=num_classes,
    )


def _vmem_capacity_bytes():
    try:
        return int(pltpu.get_tpu_info().vmem_capacity_bytes)
    except Exception:
        return 64 << 20          # conservative fallback: v7x per-TC VMEM


def _pick_batch_tile(B, L, D, tnf_pad, nf_pad, fn_pad, c_pad, batch_tile=None):
    """Largest sublane-aligned batch tile that fits the per-generation VMEM
    budget, preferring tb*L % 256 == 0 (full 256-deep MXU passes on v6e/v7x).
    Returns (tb, vmem_limit_bytes)."""
    cap = _vmem_capacity_bytes()
    budget = int(cap * 0.6)       # headroom for compiler temps / regalloc
    # Resident weight bytes (constant index maps; x2 for double buffering).
    fixed = 2 * (D * tnf_pad * 2 + fn_pad * 4 + fn_pad * c_pad * 2 + c_pad * 4)
    # Peak VMEM bytes per batch row inside one grid step.
    per_row = (2 * L * D * 2          # double-buffered bf16 emb input
               + L * D * 2            # reshaped matmul LHS copy
               + L * tnf_pad * 4      # f32 projection slab `p`
               + 2 * L * nf_pad * 4   # shifted-add accumulator + temp
               + 2 * c_pad * 4)       # double-buffered f32 logits tile

    if batch_tile is not None:
        tb = max(_SUBLANE, (int(batch_tile) // _SUBLANE) * _SUBLANE)
    else:
        tb = max(_SUBLANE, (budget - fixed) // per_row)
        tb = min(tb, 2048, _round_up(B, _SUBLANE))
        align = math.lcm(_SUBLANE, 256 // math.gcd(L, 256))
        if tb >= align and B >= align:
            tb = (tb // align) * align
        else:
            tb = max(_SUBLANE, (tb // _SUBLANE) * _SUBLANE)

    vmem_need = tb * per_row + fixed + (4 << 20)
    vmem_limit = int(min(cap - (2 << 20), max(vmem_need, 32 << 20)))
    return int(tb), vmem_limit


def textcnn_forward(fused, ids, *, batch_tile=None):
    """ids: (B, L) int32 token ids.  Returns (B, num_classes) f32 logits."""
    Ks = fused["filter_sizes"]
    nf_pad = fused["nf_pad"]
    fn_pad = len(Ks) * nf_pad
    c_pad = fused["fc_w_pad"].shape[1]
    tnf_pad = fused["w_all"].shape[1]

    # Frozen pretrained embedding lookup (gather) in bf16 -- plain-JAX glue.
    # TODO(synk): fuse this gather into the kernel via scalar-prefetched ids +
    # per-row DMA gather from the HBM-resident table to avoid the HBM round
    # trip of the (B, L, D) intermediate (bf16 already halves it vs f32).
    emb = jnp.take(fused["embedding"], ids, axis=0)          # (B, L, D) bf16
    B, L, D = emb.shape

    tb, vmem_limit = _pick_batch_tile(B, L, D, tnf_pad, nf_pad, fn_pad, c_pad,
                                      batch_tile=batch_tile)

    b_pad = _round_up(B, tb)
    if b_pad != B:
        emb = jnp.pad(emb, ((0, b_pad - B), (0, 0), (0, 0)))

    kernel = functools.partial(_textcnn_kernel,
                               filter_sizes=Ks, group_width=nf_pad)

    flops = 2 * b_pad * L * D * tnf_pad + 2 * b_pad * fn_pad * c_pad
    bytes_accessed = (b_pad * L * D * 2 + D * tnf_pad * 2 + fn_pad * 4
                      + fn_pad * c_pad * 2 + c_pad * 4 + b_pad * c_pad * 4)

    out = pl.pallas_call(
        kernel,
        out_shape=jax.ShapeDtypeStruct((b_pad, c_pad), jnp.float32),
        grid=(b_pad // tb,),
        in_specs=[
            pl.BlockSpec((tb, L, D), lambda i: (i, 0, 0)),
            pl.BlockSpec((D, tnf_pad), lambda i: (0, 0)),
            pl.BlockSpec((1, fn_pad), lambda i: (0, 0)),
            pl.BlockSpec((fn_pad, c_pad), lambda i: (0, 0)),
            pl.BlockSpec((1, c_pad), lambda i: (0, 0)),
        ],
        out_specs=pl.BlockSpec((tb, c_pad), lambda i: (i, 0)),
        compiler_params=pltpu.CompilerParams(
            dimension_semantics=("parallel",),
            vmem_limit_bytes=vmem_limit),
        cost_estimate=pl.CostEstimate(
            flops=int(flops), transcendentals=0,
            bytes_accessed=int(bytes_accessed)),
    )(emb, fused["w_all"], fused["conv_b_all"],
      fused["fc_w_pad"], fused["fc_b_pad"])

    return out[:B, :fused["num_classes"]]


def reference_forward(embedding, conv_w_pt, conv_b, fc_w_pt, fc_b,
                      filter_sizes, ids):
    """Pure-JAX f32 reference mirroring the PyTorch forward exactly."""
    emb = jnp.take(embedding, ids, axis=0)             # (B, L, D)
    L = emb.shape[1]
    outs = []
    for j, k in enumerate(filter_sizes):
        w = conv_w_pt[j][:, 0]                         # (NF, k, D)
        lo = L - k + 1
        conv = sum(
            jnp.einsum("bld,fd->blf", emb[:, i:i + lo, :], w[:, i, :])
            for i in range(k)
        ) + conv_b[j]
        conv = jnp.maximum(conv, 0.0)                  # relu(conv(x))
        outs.append(jnp.max(conv, axis=1))             # max_pool1d over time
    feats = jnp.concatenate(outs, axis=1)
    return feats @ fc_w_pt.T + fc_b                    # dropout = identity


if __name__ == "__main__":
    # Small config consistent with the module.
    Vocab, D, NF, Cla = 100, 32, 8, 4      # n_vocab, embed_size, num_filters, num_classes
    Ks = (3, 4, 5)                         # filter_sizes
    B, L = 16, 16                          # batch, sequence length

    key = jax.random.PRNGKey(0)
    keys = jax.random.split(key, 4 + 2 * len(Ks))

    emb_table = jax.random.normal(keys[0], (Vocab, D), jnp.float32) * 0.1

    conv_w_pt, conv_b = [], []
    for j, k in enumerate(Ks):
        # PyTorch Conv2d weight shape (NF, Ci=1, k, D).
        conv_w_pt.append(
            jax.random.normal(keys[1 + 2 * j], (NF, 1, k, D), jnp.float32) * 0.1)
        conv_b.append(
            jax.random.normal(keys[2 + 2 * j], (NF,), jnp.float32) * 0.1)

    # PyTorch Linear weight (Cla, NF*len(Ks)).
    fc_w_pt = jax.random.normal(
        keys[1 + 2 * len(Ks)], (Cla, NF * len(Ks)), jnp.float32) * 0.1
    fc_b = jax.random.normal(keys[2 + 2 * len(Ks)], (Cla,), jnp.float32) * 0.1

    ids = jax.random.randint(keys[3 + 2 * len(Ks)], (B, L), 0, Vocab, jnp.int32)
    x = (ids,)  # mimic the torch forward signature where x[0] are token ids

    fused = build_fused_params(
        emb_table, conv_w_pt, conv_b, fc_w_pt, fc_b, Ks, NF, Cla)

    out = textcnn_forward(fused, x[0])     # auto, VMEM-sized batch tile
    jax.block_until_ready(out)

    ref = reference_forward(emb_table, conv_w_pt, conv_b, fc_w_pt, fc_b, Ks, x[0])
    assert out.shape == (B, Cla)
    # bf16 MXU path vs f32 reference -> loosened tolerance (expected, not a bug).
    np.testing.assert_allclose(np.asarray(out), np.asarray(ref),
                               rtol=5e-2, atol=1e-2)
    print("KERNEL_OK")
</pallas_src>

<mosaic_0001>
module attributes {stable_mosaic.version = 11 : i64} {
  func.func @_textcnn_kernel(%arg0: i32, %arg1: memref<16x16x32xbf16, #tpu.memory_space<vmem>>, %arg2: memref<32x128xbf16, #tpu.memory_space<vmem>>, %arg3: memref<1x24xf32, #tpu.memory_space<vmem>>, %arg4: memref<24x128xbf16, #tpu.memory_space<vmem>>, %arg5: memref<1x128xf32, #tpu.memory_space<vmem>>, %arg6: memref<16x128xf32, #tpu.memory_space<vmem>>) attributes {dimension_semantics = [#tpu.dimension_semantics<parallel>], iteration_bounds = array<i64: 1>, scalar_prefetch = 0 : i64, scratch_operands = 0 : i64, tpu.core_type = #tpu.core_type<tc>, window_params = [{transform_indices = @transform_0, window_bounds = array<i64: 16, 16, 32>}, {pipeline_mode = #tpu.pipeline_mode<synchronous>, transform_indices = @transform_1, window_bounds = array<i64: 32, 128>}, {pipeline_mode = #tpu.pipeline_mode<synchronous>, transform_indices = @transform_2, window_bounds = array<i64: 1, 24>}, {pipeline_mode = #tpu.pipeline_mode<synchronous>, transform_indices = @transform_3, window_bounds = array<i64: 24, 128>}, {pipeline_mode = #tpu.pipeline_mode<synchronous>, transform_indices = @transform_4, window_bounds = array<i64: 1, 128>}, {transform_indices = @transform_5, window_bounds = array<i64: 16, 128>}]} {
    %c0 = arith.constant 0 : index
    %c0_0 = arith.constant 0 : index
    %c0_1 = arith.constant 0 : index
    %0 = vector.load %arg1[%c0, %c0_0, %c0_1] : memref<16x16x32xbf16, #tpu.memory_space<vmem>>, vector<16x16x32xbf16>
    %1 = vector.shape_cast %0 : vector<16x16x32xbf16> to vector<256x32xbf16>
    %c0_2 = arith.constant 0 : index
    %c0_3 = arith.constant 0 : index
    %2 = vector.load %arg2[%c0_2, %c0_3] : memref<32x128xbf16, #tpu.memory_space<vmem>>, vector<32x128xbf16>
    %cst = arith.constant dense<0.000000e+00> : vector<256x128xf32>
    %3 = tpu.matmul %1, %2, %cst {dimension_numbers = #tpu.dot_dimension_numbers<[1], [0], [0], [1], [0, 0, 1, 1], [], []>} : vector<256x32xbf16>, vector<32x128xbf16>, vector<256x128xf32> -> vector<256x128xf32>
    %4 = vector.shape_cast %3 : vector<256x128xf32> to vector<16x16x128xf32>
    %5 = vector.extract_strided_slice %4 {offsets = [0, 0, 0], sizes = [16, 14, 8], strides = [1, 1, 1]} : vector<16x16x128xf32> to vector<16x14x8xf32>
    %6 = vector.extract_strided_slice %4 {offsets = [0, 1, 8], sizes = [16, 14, 8], strides = [1, 1, 1]} : vector<16x16x128xf32> to vector<16x14x8xf32>
    %7 = arith.addf %5, %6 : vector<16x14x8xf32>
    %8 = vector.extract_strided_slice %4 {offsets = [0, 2, 16], sizes = [16, 14, 8], strides = [1, 1, 1]} : vector<16x16x128xf32> to vector<16x14x8xf32>
    %9 = arith.addf %7, %8 : vector<16x14x8xf32>
    %cst_4 = arith.constant dense<0xFF800000> : vector<16x8xf32>
    %10 = vector.multi_reduction <maximumf>, %9, %cst_4 [1] : vector<16x14x8xf32> to vector<16x8xf32>
    %11 = vector.extract_strided_slice %4 {offsets = [0, 0, 24], sizes = [16, 13, 8], strides = [1, 1, 1]} : vector<16x16x128xf32> to vector<16x13x8xf32>
    %12 = vector.extract_strided_slice %4 {offsets = [0, 1, 32], sizes = [16, 13, 8], strides = [1, 1, 1]} : vector<16x16x128xf32> to vector<16x13x8xf32>
    %13 = arith.addf %11, %12 : vector<16x13x8xf32>
    %14 = vector.extract_strided_slice %4 {offsets = [0, 2, 40], sizes = [16, 13, 8], strides = [1, 1, 1]} : vector<16x16x128xf32> to vector<16x13x8xf32>
    %15 = arith.addf %13, %14 : vector<16x13x8xf32>
    %16 = vector.extract_strided_slice %4 {offsets = [0, 3, 48], sizes = [16, 13, 8], strides = [1, 1, 1]} : vector<16x16x128xf32> to vector<16x13x8xf32>
    %17 = arith.addf %15, %16 : vector<16x13x8xf32>
    %cst_5 = arith.constant dense<0xFF800000> : vector<16x8xf32>
    %18 = vector.multi_reduction <maximumf>, %17, %cst_5 [1] : vector<16x13x8xf32> to vector<16x8xf32>
    %19 = vector.extract_strided_slice %4 {offsets = [0, 0, 56], sizes = [16, 12, 8], strides = [1, 1, 1]} : vector<16x16x128xf32> to vector<16x12x8xf32>
    %20 = vector.extract_strided_slice %4 {offsets = [0, 1, 64], sizes = [16, 12, 8], strides = [1, 1, 1]} : vector<16x16x128xf32> to vector<16x12x8xf32>
    %21 = arith.addf %19, %20 : vector<16x12x8xf32>
    %22 = vector.extract_strided_slice %4 {offsets = [0, 2, 72], sizes = [16, 12, 8], strides = [1, 1, 1]} : vector<16x16x128xf32> to vector<16x12x8xf32>
    %23 = arith.addf %21, %22 : vector<16x12x8xf32>
    %24 = vector.extract_strided_slice %4 {offsets = [0, 3, 80], sizes = [16, 12, 8], strides = [1, 1, 1]} : vector<16x16x128xf32> to vector<16x12x8xf32>
    %25 = arith.addf %23, %24 : vector<16x12x8xf32>
    %26 = vector.extract_strided_slice %4 {offsets = [0, 4, 88], sizes = [16, 12, 8], strides = [1, 1, 1]} : vector<16x16x128xf32> to vector<16x12x8xf32>
    %27 = arith.addf %25, %26 : vector<16x12x8xf32>
    %cst_6 = arith.constant dense<0xFF800000> : vector<16x8xf32>
    %28 = vector.multi_reduction <maximumf>, %27, %cst_6 [1] : vector<16x12x8xf32> to vector<16x8xf32>
    %29 = tpu.concatenate %10, %18, %28 in 1 : vector<16x8xf32>, vector<16x8xf32>, vector<16x8xf32> -> vector<16x24xf32>
    %c0_7 = arith.constant 0 : index
    %c0_8 = arith.constant 0 : index
    %30 = vector.load %arg3[%c0_7, %c0_8] : memref<1x24xf32, #tpu.memory_space<vmem>>, vector<1x24xf32>
    %31 = vector.broadcast %30 : vector<1x24xf32> to vector<16x24xf32>
    %32 = arith.addf %29, %31 : vector<16x24xf32>
    %cst_9 = arith.constant 0.000000e+00 : f32
    %33 = vector.broadcast %cst_9 : f32 to vector<16x24xf32>
    %34 = arith.maximumf %32, %33 : vector<16x24xf32>
    %35 = arith.truncf %34 : vector<16x24xf32> to vector<16x24xbf16>
    %c0_10 = arith.constant 0 : index
    %c0_11 = arith.constant 0 : index
    %36 = vector.load %arg4[%c0_10, %c0_11] : memref<24x128xbf16, #tpu.memory_space<vmem>>, vector<24x128xbf16>
    %cst_12 = arith.constant dense<0.000000e+00> : vector<16x128xf32>
    %37 = tpu.matmul %35, %36, %cst_12 {dimension_numbers = #tpu.dot_dimension_numbers<[1], [0], [0], [1], [0, 0, 1, 1], [], []>} : vector<16x24xbf16>, vector<24x128xbf16>, vector<16x128xf32> -> vector<16x128xf32>
    %c0_13 = arith.constant 0 : index
    %c0_14 = arith.constant 0 : index
    %38 = vector.load %arg5[%c0_13, %c0_14] : memref<1x128xf32, #tpu.memory_space<vmem>>, vector<1x128xf32>
    %39 = vector.broadcast %38 : vector<1x128xf32> to vector<16x128xf32>
    %40 = arith.addf %37, %39 : vector<16x128xf32>
    %c0_15 = arith.constant 0 : index
    %c0_16 = arith.constant 0 : index
    %41 = vector.load %arg6[%c0_15, %c0_16] : memref<16x128xf32, #tpu.memory_space<vmem>>, vector<16x128xf32>
    tpu.vector_store %arg6[%c0_15, %c0_16], %40 {strides = array<i32>} : memref<16x128xf32, #tpu.memory_space<vmem>>, vector<16x128xf32>,
    return
  }
  func.func @transform_0(%arg0: i32) -> (i32, i32, i32) {
    %c0_i32 = arith.constant 0 : i32
    %c0_i32_0 = arith.constant 0 : i32
    %c0_i32_1 = arith.constant 0 : i32
    return %arg0, %c0_i32, %c0_i32_0 : i32, i32, i32
  }
  func.func @transform_1(%arg0: i32) -> (i32, i32) {
    %c0_i32 = arith.constant 0 : i32
    %c0_i32_0 = arith.constant 0 : i32
    %c0_i32_1 = arith.constant 0 : i32
    return %c0_i32, %c0_i32_0 : i32, i32
  }
  func.func @transform_2(%arg0: i32) -> (i32, i32) {
    %c0_i32 = arith.constant 0 : i32
    %c0_i32_0 = arith.constant 0 : i32
    %c0_i32_1 = arith.constant 0 : i32
    return %c0_i32, %c0_i32_0 : i32, i32
  }
  func.func @transform_3(%arg0: i32) -> (i32, i32) {
    %c0_i32 = arith.constant 0 : i32
    %c0_i32_0 = arith.constant 0 : i32
    %c0_i32_1 = arith.constant 0 : i32
    return %c0_i32, %c0_i32_0 : i32, i32
  }
  func.func @transform_4(%arg0: i32) -> (i32, i32) {
    %c0_i32 = arith.constant 0 : i32
    %c0_i32_0 = arith.constant 0 : i32
    %c0_i32_1 = arith.constant 0 : i32
    return %c0_i32, %c0_i32_0 : i32, i32
  }
  func.func @transform_5(%arg0: i32) -> (i32, i32) {
    %c0_i32 = arith.constant 0 : i32
    %c0_i32_0 = arith.constant 0 : i32
    return %arg0, %c0_i32 : i32, i32
  }
}

</mosaic_0001>

<llo_original>
// kernel: tpu_custom_call.1
$region0: #{tpu_custom_call.1}
  #allocation0 [shape = 'u32[]', space=smem, size = 0x4, offset = 0x4, fixed_abs, tag = 'smem constant byte address 0x4 - core index']
  #allocation1 [shape = 'u32[72,128]{1,0:T(1,128)}', space=vmem, size = 0x9000, scoped, tag = 'internal scratch']
  %s0 = inlined_call_operand.hbm [shape: bf16[16,16,32], index: 0, kind: input, shape index: {}]
  %s1 = inlined_call_operand.hbm [shape: bf16[32,128], index: 1, kind: input, shape index: {}]
  %s2 = inlined_call_operand.vmem [shape: f32[1,24], index: 2, kind: input, shape index: {}]
  %s3 = inlined_call_operand.hbm [shape: bf16[24,128], index: 3, kind: input, shape index: {}]
  %s4 = inlined_call_operand.vmem [shape: f32[1,128], index: 4, kind: input, shape index: {}]
  %s5 = inlined_call_operand.hbm [shape: f32[16,128], index: 5, kind: output, shape index: {}]
  %s6 = sld [smem:[#allocation0]]
  $region42: #{tpu_custom_call.1} parent=0
    _
  %s8 = ssub.s32 1, %s6
  %s9 = scalar_select 0, %s8, %s6
  $region1: #{tpu_custom_call.1} parent=0
    #allocation2 [shape = 'u8[65536]{0}', space=vmem, size = 0x10000, scoped, tag = 'input window, operand 0, single buffered']
    #allocation3 [shape = 's32[1]{0}', space=sflag, size = 0x4, scoped, tag = 'scoped memory for tpu_custom_call.1']
    #allocation4 [shape = 's32[1]{0}', space=sflag, size = 0x4, scoped, tag = 'scoped memory for tpu_custom_call.1']
    #allocation5 [shape = 'u8[8192]{0}', space=vmem, size = 0x2000, scoped, tag = 'input window, operand 1, single buffered']
    #allocation6 [shape = 's32[1]{0}', space=sflag, size = 0x4, scoped, tag = 'scoped memory for tpu_custom_call.1']
    #allocation7 [shape = 'u8[6144]{0}', space=vmem, size = 0x1800, scoped, tag = 'input window, operand 3, single buffered']
    #allocation8 [shape = 'u8[8192]{0}', space=vmem, size = 0x2000, scoped, tag = 'output window, operand 0, single buffered']
    %10 = vsyncpa [#allocation3], 0
    %11 = vsyncpa [#allocation6], 0
    %12 = vsyncpa [#allocation4], 0
    // Predicated region
    $region2: #{tpu_custom_call.1} parent=1 // pred_check
      _
    $region3: #{tpu_custom_call.1} parent=1 // pred_check_branch
      %14 = sbr.rel (0) target = $region5
    $region4: #{tpu_custom_call.1} parent=1 // pred_region
      %16 = vsyncadd [#allocation3], 0
      %s17 = sshll.u32 %s0, 4
      %s18 = int_to_ptr.hbm [resolvable:$true] %s17
      %s19 = sshll.u32 [#allocation2], 4
      %s20 = int_to_ptr.vmem [resolvable:$true] %s19
      %25 = dma.hbm_to_vmem [thread:$0]  %s18, 2048, %s20, [#allocation3], 64, 64, 4
    $region5: #{tpu_custom_call.1} parent=1 // pred_fallthru
      _
    // Predicated region
    $region6: #{tpu_custom_call.1} parent=1 // pred_check
      _
    $region7: #{tpu_custom_call.1} parent=1 // pred_check_branch
      %27 = sbr.rel (0) target = $region9
    $region8: #{tpu_custom_call.1} parent=1 // pred_region
      %29 = vsyncadd [#allocation6], 0
      %s30 = sshll.u32 %s1, 4
      %s31 = int_to_ptr.hbm [resolvable:$true] %s30
      %s32 = sshll.u32 [#allocation5], 4
      %s33 = int_to_ptr.vmem [resolvable:$true] %s32
      %38 = dma.hbm_to_vmem [thread:$0]  %s31, 256, %s33, [#allocation6], 64, 64, 4
    $region9: #{tpu_custom_call.1} parent=1 // pred_fallthru
      _
    // Predicated region
    $region10: #{tpu_custom_call.1} parent=1 // pred_check
      _
    $region11: #{tpu_custom_call.1} parent=1 // pred_check_branch
      %40 = sbr.rel (0) target = $region13
    $region12: #{tpu_custom_call.1} parent=1 // pred_region
      _
    $region13: #{tpu_custom_call.1} parent=1 // pred_fallthru
      _
    // Predicated region
    $region14: #{tpu_custom_call.1} parent=1 // pred_check
      _
    $region15: #{tpu_custom_call.1} parent=1 // pred_check_branch
      %42 = sbr.rel (0) target = $region17
    $region16: #{tpu_custom_call.1} parent=1 // pred_region
      %44 = vsyncadd [#allocation6], 0
      %s45 = sshll.u32 %s3, 4
      %s46 = int_to_ptr.hbm [resolvable:$true] %s45
      %s47 = sshll.u32 [#allocation7], 4
      %s48 = int_to_ptr.vmem [resolvable:$true] %s47
      %53 = dma.hbm_to_vmem [thread:$0]  %s46, 192, %s48, [#allocation6], 64, 64, 4
    $region17: #{tpu_custom_call.1} parent=1 // pred_fallthru
      _
    // Predicated region
    $region18: #{tpu_custom_call.1} parent=1 // pred_check
      _
    $region19: #{tpu_custom_call.1} parent=1 // pred_check_branch
      %55 = sbr.rel (0) target = $region21
    $region20: #{tpu_custom_call.1} parent=1 // pred_region
      _
    $region21: #{tpu_custom_call.1} parent=1 // pred_fallthru
      _
    // Predicated region
    $region22: #{tpu_custom_call.1} parent=1 // pred_check
      _
    $region23: #{tpu_custom_call.1} parent=1 // pred_check_branch
      %57 = sbr.rel (0) target = $region25
    $region24: #{tpu_custom_call.1} parent=1 // pred_region
      %59 = dma.done [#allocation3], 2048
    $region25: #{tpu_custom_call.1} parent=1 // pred_fallthru
      _
    // Predicated region
    $region26: #{tpu_custom_call.1} parent=1 // pred_check
      _
    $region27: #{tpu_custom_call.1} parent=1 // pred_check_branch
      %61 = sbr.rel (0) target = $region29
    $region28: #{tpu_custom_call.1} parent=1 // pred_region
      %63 = dma.done [#allocation6], 256
    $region29: #{tpu_custom_call.1} parent=1 // pred_fallthru
      _
    // Predicated region
    $region30: #{tpu_custom_call.1} parent=1 // pred_check
      _
    $region31: #{tpu_custom_call.1} parent=1 // pred_check_branch
      %65 = sbr.rel (0) target = $region33
    $region32: #{tpu_custom_call.1} parent=1 // pred_region
      %67 = dma.done [#allocation6], 192
    $region33: #{tpu_custom_call.1} parent=1 // pred_fallthru
      _
    %v69 = vld [vmem:[#allocation2] sm:$0xf]
    %v70 = vld [vmem:[#allocation2 + $0x4] sm:$0xf]
    %v71 = vld [vmem:[#allocation2 + $0x8] sm:$0xf]
    %v72 = vld [vmem:[#allocation2 + $0xc] sm:$0xf]
    %v73 = vld [vmem:[#allocation2 + $0x10] sm:$0xf]
    %v74 = vld [vmem:[#allocation2 + $0x14] sm:$0xf]
    %v75 = vld [vmem:[#allocation2 + $0x18] sm:$0xf]
    %v76 = vld [vmem:[#allocation2 + $0x1c] sm:$0xf]
    %v77 = vld [vmem:[#allocation2 + $0x20] sm:$0xf]
    %v78 = vld [vmem:[#allocation2 + $0x24] sm:$0xf]
    %v79 = vld [vmem:[#allocation2 + $0x28] sm:$0xf]
    %v80 = vld [vmem:[#allocation2 + $0x2c] sm:$0xf]
    %v81 = vld [vmem:[#allocation2 + $0x30] sm:$0xf]
    %v82 = vld [vmem:[#allocation2 + $0x34] sm:$0xf]
    %v83 = vld [vmem:[#allocation2 + $0x38] sm:$0xf]
    %v84 = vld [vmem:[#allocation2 + $0x3c] sm:$0xf]
    %v85 = vld [vmem:[#allocation2 + $0x40] sm:$0xf]
    %v86 = vld [vmem:[#allocation2 + $0x44] sm:$0xf]
    %v87 = vld [vmem:[#allocation2 + $0x48] sm:$0xf]
    %v88 = vld [vmem:[#allocation2 + $0x4c] sm:$0xf]
    %v89 = vld [vmem:[#allocation2 + $0x50] sm:$0xf]
    %v90 = vld [vmem:[#allocation2 + $0x54] sm:$0xf]
    %v91 = vld [vmem:[#allocation2 + $0x58] sm:$0xf]
    %v92 = vld [vmem:[#allocation2 + $0x5c] sm:$0xf]
    %v93 = vld [vmem:[#allocation2 + $0x60] sm:$0xf]
    %v94 = vld [vmem:[#allocation2 + $0x64] sm:$0xf]
    %v95 = vld [vmem:[#allocation2 + $0x68] sm:$0xf]
    %v96 = vld [vmem:[#allocation2 + $0x6c] sm:$0xf]
    %v97 = vld [vmem:[#allocation2 + $0x70] sm:$0xf]
    %v98 = vld [vmem:[#allocation2 + $0x74] sm:$0xf]
    %v99 = vld [vmem:[#allocation2 + $0x78] sm:$0xf]
    %v100 = vld [vmem:[#allocation2 + $0x7c] sm:$0xf]
    %v101 = vld [vmem:[#allocation5] sm:$0xf]
    %v102 = vld [vmem:[#allocation5 + $0x4] sm:$0xf]
    %v103 = vld [vmem:[#allocation5 + $0x8] sm:$0xf]
    %v104 = vld [vmem:[#allocation5 + $0xc] sm:$0xf]
    %v137 = vunpack.c.l.b16 %v69
    %v138 = vunpack.c.l.b16 %v70
    %v139 = vunpack.c.l.b16 %v71
    %v140 = vunpack.c.l.b16 %v72
    %v141 = vunpack.c.l.b16 %v73
    %v142 = vunpack.c.l.b16 %v74
    %v143 = vunpack.c.l.b16 %v75
    %v144 = vunpack.c.l.b16 %v76
    %v145 = vunpack.c.l.b16 %v77
    %v146 = vunpack.c.l.b16 %v78
    %v147 = vunpack.c.l.b16 %v79
    %v148 = vunpack.c.l.b16 %v80
    %v149 = vunpack.c.l.b16 %v81
    %v150 = vunpack.c.l.b16 %v82
    %v151 = vunpack.c.l.b16 %v83
    %v152 = vunpack.c.l.b16 %v84
    %v153 = vunpack.c.l.b16 %v85
    %v154 = vunpack.c.l.b16 %v86
    %v155 = vunpack.c.l.b16 %v87
    %v156 = vunpack.c.l.b16 %v88
    %v157 = vunpack.c.l.b16 %v89
    %v158 = vunpack.c.l.b16 %v90
    %v159 = vunpack.c.l.b16 %v91
    %v160 = vunpack.c.l.b16 %v92
    %v161 = vunpack.c.l.b16 %v93
    %v162 = vunpack.c.l.b16 %v94
    %v163 = vunpack.c.l.b16 %v95
    %v164 = vunpack.c.l.b16 %v96
    %v165 = vunpack.c.l.b16 %v97
    %v166 = vunpack.c.l.b16 %v98
    %v167 = vunpack.c.l.b16 %v99
    %v168 = vunpack.c.l.b16 %v100
    %v169 = vpack.c.b16 %v138, %v137
    %v170 = vpack.c.b16 %v140, %v139
    %v171 = vpack.c.b16 %v142, %v141
    %v172 = vpack.c.b16 %v144, %v143
    %v173 = vpack.c.b16 %v146, %v145
    %v174 = vpack.c.b16 %v148, %v147
    %v175 = vpack.c.b16 %v150, %v149
    %v176 = vpack.c.b16 %v152, %v151
    %v177 = vpack.c.b16 %v154, %v153
    %v178 = vpack.c.b16 %v156, %v155
    %v179 = vpack.c.b16 %v158, %v157
    %v180 = vpack.c.b16 %v160, %v159
    %v181 = vpack.c.b16 %v162, %v161
    %v182 = vpack.c.b16 %v164, %v163
    %v183 = vpack.c.b16 %v166, %v165
    %v184 = vpack.c.b16 %v168, %v167
    %v189 = vunpack.c.l.b16 %v101
    %v190 = vunpack.c.l.b16 %v102
    %v191 = vunpack.c.l.b16 %v103
    %v192 = vunpack.c.l.b16 %v104
    %v193 = vpack.c.b16 %v190, %v189
    %v194 = vpack.c.b16 %v192, %v191
    %vm197 = vcmask 261120
    %v199 = vsel %vm197, %v169, 0
    %v202 = vsel %vm197, %v170, 0
    %v205 = vsel %vm197, %v171, 0
    %v208 = vsel %vm197, %v172, 0
    %v211 = vsel %vm197, %v173, 0
    %v214 = vsel %vm197, %v174, 0
    %v217 = vsel %vm197, %v175, 0
    %v220 = vsel %vm197, %v176, 0
    %v223 = vsel %vm197, %v177, 0
    %v226 = vsel %vm197, %v178, 0
    %v229 = vsel %vm197, %v179, 0
    %v232 = vsel %vm197, %v180, 0
    %v235 = vsel %vm197, %v181, 0
    %v238 = vsel %vm197, %v182, 0
    %v241 = vsel %vm197, %v183, 0
    %v244 = vsel %vm197, %v184, 0
    %246 = vmatpush.bf16.msra.mxu0 0
    %247 = vmatpush.bf16.msra.mxu0 0
    %248 = vmatpush.bf16.msra.mxu0 0
    %249 = vmatpush.bf16.msra.mxu0 0
    %250 = vmatpush.bf16.msra.mxu0 0
    %251 = vmatpush.bf16.msra.mxu0 0
    %252 = vmatpush.bf16.msra.mxu0 %v194
    %253 = vmatpush.bf16.msra.mxu0 %v193
    %254 = vmatmul.bf16.gmra.mxu0 %v199
    %v255 = vpop.f32.mrf.mxu0
    %v256 = vadd.f32 0.0, %v255
    %v257 = vpop.f32.mrf.mxu0
    %v258 = vadd.f32 0.0, %v257
    %259 = vmatmul.bf16.gmra.mxu0 %v202
    %v260 = vpop.f32.mrf.mxu0
    %v261 = vadd.f32 0.0, %v260
    %v262 = vpop.f32.mrf.mxu0
    %v263 = vadd.f32 0.0, %v262
    %264 = vmatmul.bf16.gmra.mxu0 %v205
    %v265 = vpop.f32.mrf.mxu0
    %v266 = vadd.f32 0.0, %v265
    %v267 = vpop.f32.mrf.mxu0
    %v268 = vadd.f32 0.0, %v267
    %269 = vmatmul.bf16.gmra.mxu0 %v208
    %v270 = vpop.f32.mrf.mxu0
    %v271 = vadd.f32 0.0, %v270
    %v272 = vpop.f32.mrf.mxu0
    %v273 = vadd.f32 0.0, %v272
    %274 = vmatmul.bf16.gmra.mxu0 %v211
    %v275 = vpop.f32.mrf.mxu0
    %v276 = vadd.f32 0.0, %v275
    %v277 = vpop.f32.mrf.mxu0
    %v278 = vadd.f32 0.0, %v277
    %279 = vmatmul.bf16.gmra.mxu0 %v214
    %v280 = vpop.f32.mrf.mxu0
    %v281 = vadd.f32 0.0, %v280
    %v282 = vpop.f32.mrf.mxu0
    %v283 = vadd.f32 0.0, %v282
    %284 = vmatmul.bf16.gmra.mxu0 %v217
    %v285 = vpop.f32.mrf.mxu0
    %v286 = vadd.f32 0.0, %v285
    %v287 = vpop.f32.mrf.mxu0
    %v288 = vadd.f32 0.0, %v287
    %289 = vmatmul.bf16.gmra.mxu0 %v220
    %v290 = vpop.f32.mrf.mxu0
    %v291 = vadd.f32 0.0, %v290
    %v292 = vpop.f32.mrf.mxu0
    %v293 = vadd.f32 0.0, %v292
    %294 = vmatmul.bf16.gmra.mxu0 %v223
    %v295 = vpop.f32.mrf.mxu0
    %v296 = vadd.f32 0.0, %v295
    %v297 = vpop.f32.mrf.mxu0
    %v298 = vadd.f32 0.0, %v297
    %299 = vmatmul.bf16.gmra.mxu0 %v226
    %v300 = vpop.f32.mrf.mxu0
    %v301 = vadd.f32 0.0, %v300
    %v302 = vpop.f32.mrf.mxu0
    %v303 = vadd.f32 0.0, %v302
    %304 = vmatmul.bf16.gmra.mxu0 %v229
    %v305 = vpop.f32.mrf.mxu0
    %v306 = vadd.f32 0.0, %v305
    %v307 = vpop.f32.mrf.mxu0
    %v308 = vadd.f32 0.0, %v307
    %309 = vmatmul.bf16.gmra.mxu0 %v232
    %v310 = vpop.f32.mrf.mxu0
    %v311 = vadd.f32 0.0, %v310
    %v312 = vpop.f32.mrf.mxu0
    %v313 = vadd.f32 0.0, %v312
    %314 = vmatmul.bf16.gmra.mxu0 %v235
    %v315 = vpop.f32.mrf.mxu0
    %v316 = vadd.f32 0.0, %v315
    %v317 = vpop.f32.mrf.mxu0
    %v318 = vadd.f32 0.0, %v317
    %319 = vmatmul.bf16.gmra.mxu0 %v238
    %v320 = vpop.f32.mrf.mxu0
    %v321 = vadd.f32 0.0, %v320
    %v322 = vpop.f32.mrf.mxu0
    %v323 = vadd.f32 0.0, %v322
    %324 = vmatmul.bf16.gmra.mxu0 %v241
    %v325 = vpop.f32.mrf.mxu0
    %v326 = vadd.f32 0.0, %v325
    %v327 = vpop.f32.mrf.mxu0
    %v328 = vadd.f32 0.0, %v327
    %329 = vmatmul.bf16.gmra.mxu0 %v244
    %v330 = vpop.f32.mrf.mxu0
    %v331 = vadd.f32 0.0, %v330
    %v332 = vpop.f32.mrf.mxu0
    %v333 = vadd.f32 0.0, %v332
    %334 = vdwg.mxu0
    %vm367 = vcmask 1046528
    %v368 = vrot.slane %v256, 1
    %v369 = vrot.slane %v258, 1
    %v370 = vsel %vm367, %v368, %v369
    %v371 = vrot.slane %v261, 1
    %v372 = vrot.slane %v263, 1
    %v373 = vsel %vm367, %v371, %v372
    %v374 = vrot.slane %v266, 1
    %v375 = vrot.slane %v268, 1
    %v376 = vsel %vm367, %v374, %v375
    %v377 = vrot.slane %v271, 1
    %v378 = vrot.slane %v273, 1
    %v379 = vsel %vm367, %v377, %v378
    %v380 = vrot.slane %v276, 1
    %v381 = vrot.slane %v278, 1
    %v382 = vsel %vm367, %v380, %v381
    %v383 = vrot.slane %v281, 1
    %v384 = vrot.slane %v283, 1
    %v385 = vsel %vm367, %v383, %v384
    %v386 = vrot.slane %v286, 1
    %v387 = vrot.slane %v288, 1
    %v388 = vsel %vm367, %v386, %v387
    %v389 = vrot.slane %v291, 1
    %v390 = vrot.slane %v293, 1
    %v391 = vsel %vm367, %v389, %v390
    %v392 = vrot.slane %v296, 1
    %v393 = vrot.slane %v298, 1
    %v394 = vsel %vm367, %v392, %v393
    %v395 = vrot.slane %v301, 1
    %v396 = vrot.slane %v303, 1
    %v397 = vsel %vm367, %v395, %v396
    %v398 = vrot.slane %v306, 1
    %v399 = vrot.slane %v308, 1
    %v400 = vsel %vm367, %v398, %v399
    %v401 = vrot.slane %v311, 1
    %v402 = vrot.slane %v313, 1
    %v403 = vsel %vm367, %v401, %v402
    %v404 = vrot.slane %v316, 1
    %v405 = vrot.slane %v318, 1
    %v406 = vsel %vm367, %v404, %v405
    %v407 = vrot.slane %v321, 1
    %v408 = vrot.slane %v323, 1
    %v409 = vsel %vm367, %v407, %v408
    %v410 = vrot.slane %v326, 1
    %v411 = vrot.slane %v328, 1
    %v412 = vsel %vm367, %v410, %v411
    %v413 = vrot.slane %v331, 1
    %v414 = vrot.slane %v333, 1
    %v415 = vsel %vm367, %v413, %v414
    %416 = vrot.lane.b32.xlu0 %v370, 120
    %v417 = vpop.permute.xlu0 %416
    %418 = vrot.lane.b32.xlu0 %v369, 120
    %v419 = vpop.permute.xlu0 %418
    %420 = vrot.lane.b32.xlu0 %v373, 120
    %v421 = vpop.permute.xlu0 %420
    %422 = vrot.lane.b32.xlu0 %v372, 120
    %v423 = vpop.permute.xlu0 %422
    %424 = vrot.lane.b32.xlu0 %v376, 120
    %v425 = vpop.permute.xlu0 %424
    %426 = vrot.lane.b32.xlu0 %v375, 120
    %v427 = vpop.permute.xlu0 %426
    %428 = vrot.lane.b32.xlu0 %v379, 120
    %v429 = vpop.permute.xlu0 %428
    %430 = vrot.lane.b32.xlu0 %v378, 120
    %v431 = vpop.permute.xlu0 %430
    %432 = vrot.lane.b32.xlu0 %v382, 120
    %v433 = vpop.permute.xlu0 %432
    %434 = vrot.lane.b32.xlu0 %v381, 120
    %v435 = vpop.permute.xlu0 %434
    %436 = vrot.lane.b32.xlu0 %v385, 120
    %v437 = vpop.permute.xlu0 %436
    %438 = vrot.lane.b32.xlu0 %v384, 120
    %v439 = vpop.permute.xlu0 %438
    %440 = vrot.lane.b32.xlu0 %v388, 120
    %v441 = vpop.permute.xlu0 %440
    %442 = vrot.lane.b32.xlu0 %v387, 120
    %v443 = vpop.permute.xlu0 %442
    %444 = vrot.lane.b32.xlu0 %v391, 120
    %v445 = vpop.permute.xlu0 %444
    %446 = vrot.lane.b32.xlu0 %v390, 120
    %v447 = vpop.permute.xlu0 %446
    %448 = vrot.lane.b32.xlu0 %v394, 120
    %v449 = vpop.permute.xlu0 %448
    %450 = vrot.lane.b32.xlu0 %v393, 120
    %v451 = vpop.permute.xlu0 %450
    %452 = vrot.lane.b32.xlu0 %v397, 120
    %v453 = vpop.permute.xlu0 %452
    %454 = vrot.lane.b32.xlu0 %v396, 120
    %v455 = vpop.permute.xlu0 %454
    %456 = vrot.lane.b32.xlu0 %v400, 120
    %v457 = vpop.permute.xlu0 %456
    %458 = vrot.lane.b32.xlu0 %v399, 120
    %v459 = vpop.permute.xlu0 %458
    %460 = vrot.lane.b32.xlu0 %v403, 120
    %v461 = vpop.permute.xlu0 %460
    %462 = vrot.lane.b32.xlu0 %v402, 120
    %v463 = vpop.permute.xlu0 %462
    %464 = vrot.lane.b32.xlu0 %v406, 120
    %v465 = vpop.permute.xlu0 %464
    %466 = vrot.lane.b32.xlu0 %v405, 120
    %v467 = vpop.permute.xlu0 %466
    %468 = vrot.lane.b32.xlu0 %v409, 120
    %v469 = vpop.permute.xlu0 %468
    %470 = vrot.lane.b32.xlu0 %v408, 120
    %v471 = vpop.permute.xlu0 %470
    %472 = vrot.lane.b32.xlu0 %v412, 120
    %v473 = vpop.permute.xlu0 %472
    %474 = vrot.lane.b32.xlu0 %v411, 120
    %v475 = vpop.permute.xlu0 %474
    %476 = vrot.lane.b32.xlu0 %v415, 120
    %v477 = vpop.permute.xlu0 %476
    %478 = vrot.lane.b32.xlu0 %v414, 120
    %v479 = vpop.permute.xlu0 %478
    %v512 = vadd.f32 %v256, %v417
    %v513 = vadd.f32 %v258, %v419
    %v514 = vadd.f32 %v261, %v421
    %v515 = vadd.f32 %v263, %v423
    %v516 = vadd.f32 %v266, %v425
    %v517 = vadd.f32 %v268, %v427
    %v518 = vadd.f32 %v271, %v429
    %v519 = vadd.f32 %v273, %v431
    %v520 = vadd.f32 %v276, %v433
    %v521 = vadd.f32 %v278, %v435
    %v522 = vadd.f32 %v281, %v437
    %v523 = vadd.f32 %v283, %v439
    %v524 = vadd.f32 %v286, %v441
    %v525 = vadd.f32 %v288, %v443
    %v526 = vadd.f32 %v291, %v445
    %v527 = vadd.f32 %v293, %v447
    %v528 = vadd.f32 %v296, %v449
    %v529 = vadd.f32 %v298, %v451
    %v530 = vadd.f32 %v301, %v453
    %v531 = vadd.f32 %v303, %v455
    %v532 = vadd.f32 %v306, %v457
    %v533 = vadd.f32 %v308, %v459
    %v534 = vadd.f32 %v311, %v461
    %v535 = vadd.f32 %v313, %v463
    %v536 = vadd.f32 %v316, %v465
    %v537 = vadd.f32 %v318, %v467
    %v538 = vadd.f32 %v321, %v469
    %v539 = vadd.f32 %v323, %v471
    %v540 = vadd.f32 %v326, %v473
    %v541 = vadd.f32 %v328, %v475
    %v542 = vadd.f32 %v331, %v477
    %v543 = vadd.f32 %v333, %v479
    %vm544 = vcmask 1045504
    %v545 = vrot.slane %v256, 2
    %v546 = vrot.slane %v258, 2
    %v547 = vsel %vm544, %v545, %v546
    %v548 = vrot.slane %v261, 2
    %v549 = vrot.slane %v263, 2
    %v550 = vsel %vm544, %v548, %v549
    %v551 = vrot.slane %v266, 2
    %v552 = vrot.slane %v268, 2
    %v553 = vsel %vm544, %v551, %v552
    %v554 = vrot.slane %v271, 2
    %v555 = vrot.slane %v273, 2
    %v556 = vsel %vm544, %v554, %v555
    %v557 = vrot.slane %v276, 2
    %v558 = vrot.slane %v278, 2
    %v559 = vsel %vm544, %v557, %v558
    %v560 = vrot.slane %v281, 2
    %v561 = vrot.slane %v283, 2
    %v562 = vsel %vm544, %v560, %v561
    %v563 = vrot.slane %v286, 2
    %v564 = vrot.slane %v288, 2
    %v565 = vsel %vm544, %v563, %v564
    %v566 = vrot.slane %v291, 2
    %v567 = vrot.slane %v293, 2
    %v568 = vsel %vm544, %v566, %v567
    %v569 = vrot.slane %v296, 2
    %v570 = vrot.slane %v298, 2
    %v571 = vsel %vm544, %v569, %v570
    %v572 = vrot.slane %v301, 2
    %v573 = vrot.slane %v303, 2
    %v574 = vsel %vm544, %v572, %v573
    %v575 = vrot.slane %v306, 2
    %v576 = vrot.slane %v308, 2
    %v577 = vsel %vm544, %v575, %v576
    %v578 = vrot.slane %v311, 2
    %v579 = vrot.slane %v313, 2
    %v580 = vsel %vm544, %v578, %v579
    %v581 = vrot.slane %v316, 2
    %v582 = vrot.slane %v318, 2
    %v583 = vsel %vm544, %v581, %v582
    %v584 = vrot.slane %v321, 2
    %v585 = vrot.slane %v323, 2
    %v586 = vsel %vm544, %v584, %v585
    %v587 = vrot.slane %v326, 2
    %v588 = vrot.slane %v328, 2
    %v589 = vsel %vm544, %v587, %v588
    %v590 = vrot.slane %v331, 2
    %v591 = vrot.slane %v333, 2
    %v592 = vsel %vm544, %v590, %v591
    %593 = vrot.lane.b32.xlu0 %v547, 112
    %v594 = vpop.permute.xlu0 %593
    %595 = vrot.lane.b32.xlu0 %v546, 112
    %v596 = vpop.permute.xlu0 %595
    %597 = vrot.lane.b32.xlu0 %v550, 112
    %v598 = vpop.permute.xlu0 %597
    %599 = vrot.lane.b32.xlu0 %v549, 112
    %v600 = vpop.permute.xlu0 %599
    %601 = vrot.lane.b32.xlu0 %v553, 112
    %v602 = vpop.permute.xlu0 %601
    %603 = vrot.lane.b32.xlu0 %v552, 112
    %v604 = vpop.permute.xlu0 %603
    %605 = vrot.lane.b32.xlu0 %v556, 112
    %v606 = vpop.permute.xlu0 %605
    %607 = vrot.lane.b32.xlu0 %v555, 112
    %v608 = vpop.permute.xlu0 %607
    %609 = vrot.lane.b32.xlu0 %v559, 112
    %v610 = vpop.permute.xlu0 %609
    %611 = vrot.lane.b32.xlu0 %v558, 112
    %v612 = vpop.permute.xlu0 %611
    %613 = vrot.lane.b32.xlu0 %v562, 112
    %v614 = vpop.permute.xlu0 %613
    %615 = vrot.lane.b32.xlu0 %v561, 112
    %v616 = vpop.permute.xlu0 %615
    %617 = vrot.lane.b32.xlu0 %v565, 112
    %v618 = vpop.permute.xlu0 %617
    %619 = vrot.lane.b32.xlu0 %v564, 112
    %v620 = vpop.permute.xlu0 %619
    %621 = vrot.lane.b32.xlu0 %v568, 112
    %v622 = vpop.permute.xlu0 %621
    %623 = vrot.lane.b32.xlu0 %v567, 112
    %v624 = vpop.permute.xlu0 %623
    %625 = vrot.lane.b32.xlu0 %v571, 112
    %v626 = vpop.permute.xlu0 %625
    %627 = vrot.lane.b32.xlu0 %v570, 112
    %v628 = vpop.permute.xlu0 %627
    %629 = vrot.lane.b32.xlu0 %v574, 112
    %v630 = vpop.permute.xlu0 %629
    %631 = vrot.lane.b32.xlu0 %v573, 112
    %v632 = vpop.permute.xlu0 %631
    %633 = vrot.lane.b32.xlu0 %v577, 112
    %v634 = vpop.permute.xlu0 %633
    %635 = vrot.lane.b32.xlu0 %v576, 112
    %v636 = vpop.permute.xlu0 %635
    %637 = vrot.lane.b32.xlu0 %v580, 112
    %v638 = vpop.permute.xlu0 %637
    %639 = vrot.lane.b32.xlu0 %v579, 112
    %v640 = vpop.permute.xlu0 %639
    %641 = vrot.lane.b32.xlu0 %v583, 112
    %v642 = vpop.permute.xlu0 %641
    %643 = vrot.lane.b32.xlu0 %v582, 112
    %v644 = vpop.permute.xlu0 %643
    %645 = vrot.lane.b32.xlu0 %v586, 112
    %v646 = vpop.permute.xlu0 %645
    %647 = vrot.lane.b32.xlu0 %v585, 112
    %v648 = vpop.permute.xlu0 %647
    %649 = vrot.lane.b32.xlu0 %v589, 112
    %v650 = vpop.permute.xlu0 %649
    %651 = vrot.lane.b32.xlu0 %v588, 112
    %v652 = vpop.permute.xlu0 %651
    %653 = vrot.lane.b32.xlu0 %v592, 112
    %v654 = vpop.permute.xlu0 %653
    %655 = vrot.lane.b32.xlu0 %v591, 112
    %v656 = vpop.permute.xlu0 %655
    %v689 = vadd.f32 %v512, %v594
    %v690 = vadd.f32 %v513, %v596
    %v691 = vadd.f32 %v514, %v598
    %v692 = vadd.f32 %v515, %v600
    %v693 = vadd.f32 %v516, %v602
    %v694 = vadd.f32 %v517, %v604
    %v695 = vadd.f32 %v518, %v606
    %v696 = vadd.f32 %v519, %v608
    %v697 = vadd.f32 %v520, %v610
    %v698 = vadd.f32 %v521, %v612
    %v699 = vadd.f32 %v522, %v614
    %v700 = vadd.f32 %v523, %v616
    %v701 = vadd.f32 %v524, %v618
    %v702 = vadd.f32 %v525, %v620
    %v703 = vadd.f32 %v526, %v622
    %v704 = vadd.f32 %v527, %v624
    %v705 = vadd.f32 %v528, %v626
    %v706 = vadd.f32 %v529, %v628
    %v707 = vadd.f32 %v530, %v630
    %v708 = vadd.f32 %v531, %v632
    %v709 = vadd.f32 %v532, %v634
    %v710 = vadd.f32 %v533, %v636
    %v711 = vadd.f32 %v534, %v638
    %v712 = vadd.f32 %v535, %v640
    %v713 = vadd.f32 %v536, %v642
    %v714 = vadd.f32 %v537, %v644
    %v715 = vadd.f32 %v538, %v646
    %v716 = vadd.f32 %v539, %v648
    %v717 = vadd.f32 %v540, %v650
    %v718 = vadd.f32 %v541, %v652
    %v719 = vadd.f32 %v542, %v654
    %v720 = vadd.f32 %v543, %v656
    %vm721 = vcmask 64512
    %v722 = vsel %vm721, %v689, -inf
    %vm723 = vcmask 62464
    %v724 = vsel %vm723, %v690, -inf
    %v725 = vmax.f32 %v722, %v724
    %v726 = vrot.slane %v725, 4
    %v727 = vmax.f32 %v725, %v726
    %v728 = vrot.slane %v727, 2
    %v729 = vmax.f32 %v727, %v728
    %v730 = vrot.slane %v729, 1
    %v731 = vmax.f32 %v729, %v730
    %v732 = vsel %vm721, %v691, -inf
    %v733 = vsel %vm723, %v692, -inf
    %v734 = vmax.f32 %v732, %v733
    %v735 = vrot.slane %v734, 4
    %v736 = vmax.f32 %v734, %v735
    %v737 = vrot.slane %v736, 2
    %v738 = vmax.f32 %v736, %v737
    %v739 = vrot.slane %v738, 1
    %v740 = vmax.f32 %v738, %v739
    %v741 = vsel %vm721, %v693, -inf
    %v742 = vsel %vm723, %v694, -inf
    %v743 = vmax.f32 %v741, %v742
    %v744 = vrot.slane %v743, 4
    %v745 = vmax.f32 %v743, %v744
    %v746 = vrot.slane %v745, 2
    %v747 = vmax.f32 %v745, %v746
    %v748 = vrot.slane %v747, 1
    %v749 = vmax.f32 %v747, %v748
    %v750 = vsel %vm721, %v695, -inf
    %v751 = vsel %vm723, %v696, -inf
    %v752 = vmax.f32 %v750, %v751
    %v753 = vrot.slane %v752, 4
    %v754 = vmax.f32 %v752, %v753
    %v755 = vrot.slane %v754, 2
    %v756 = vmax.f32 %v754, %v755
    %v757 = vrot.slane %v756, 1
    %v758 = vmax.f32 %v756, %v757
    %v759 = vsel %vm721, %v697, -inf
    %v760 = vsel %vm723, %v698, -inf
    %v761 = vmax.f32 %v759, %v760
    %v762 = vrot.slane %v761, 4
    %v763 = vmax.f32 %v761, %v762
    %v764 = vrot.slane %v763, 2
    %v765 = vmax.f32 %v763, %v764
    %v766 = vrot.slane %v765, 1
    %v767 = vmax.f32 %v765, %v766
    %v768 = vsel %vm721, %v699, -inf
    %v769 = vsel %vm723, %v700, -inf
    %v770 = vmax.f32 %v768, %v769
    %v771 = vrot.slane %v770, 4
    %v772 = vmax.f32 %v770, %v771
    %v773 = vrot.slane %v772, 2
    %v774 = vmax.f32 %v772, %v773
    %v775 = vrot.slane %v774, 1
    %v776 = vmax.f32 %v774, %v775
    %v777 = vsel %vm721, %v701, -inf
    %v778 = vsel %vm723, %v702, -inf
    %v779 = vmax.f32 %v777, %v778
    %v780 = vrot.slane %v779, 4
    %v781 = vmax.f32 %v779, %v780
    %v782 = vrot.slane %v781, 2
    %v783 = vmax.f32 %v781, %v782
    %v784 = vrot.slane %v783, 1
    %v785 = vmax.f32 %v783, %v784
    %v786 = vsel %vm721, %v703, -inf
    %v787 = vsel %vm723, %v704, -inf
    %v788 = vmax.f32 %v786, %v787
    %v789 = vrot.slane %v788, 4
    %v790 = vmax.f32 %v788, %v789
    %v791 = vrot.slane %v790, 2
    %v792 = vmax.f32 %v790, %v791
    %v793 = vrot.slane %v792, 1
    %v794 = vmax.f32 %v792, %v793
    %v795 = vsel %vm721, %v705, -inf
    %v796 = vsel %vm723, %v706, -inf
    %v797 = vmax.f32 %v795, %v796
    %v798 = vrot.slane %v797, 4
    %v799 = vmax.f32 %v797, %v798
    %v800 = vrot.slane %v799, 2
    %v801 = vmax.f32 %v799, %v800
    %v802 = vrot.slane %v801, 1
    %v803 = vmax.f32 %v801, %v802
    %v804 = vsel %vm721, %v707, -inf
    %v805 = vsel %vm723, %v708, -inf
    %v806 = vmax.f32 %v804, %v805
    %v807 = vrot.slane %v806, 4
    %v808 = vmax.f32 %v806, %v807
    %v809 = vrot.slane %v808, 2
    %v810 = vmax.f32 %v808, %v809
    %v811 = vrot.slane %v810, 1
    %v812 = vmax.f32 %v810, %v811
    %v813 = vsel %vm721, %v709, -inf
    %v814 = vsel %vm723, %v710, -inf
    %v815 = vmax.f32 %v813, %v814
    %v816 = vrot.slane %v815, 4
    %v817 = vmax.f32 %v815, %v816
    %v818 = vrot.slane %v817, 2
    %v819 = vmax.f32 %v817, %v818
    %v820 = vrot.slane %v819, 1
    %v821 = vmax.f32 %v819, %v820
    %v822 = vsel %vm721, %v711, -inf
    %v823 = vsel %vm723, %v712, -inf
    %v824 = vmax.f32 %v822, %v823
    %v825 = vrot.slane %v824, 4
    %v826 = vmax.f32 %v824, %v825
    %v827 = vrot.slane %v826, 2
    %v828 = vmax.f32 %v826, %v827
    %v829 = vrot.slane %v828, 1
    %v830 = vmax.f32 %v828, %v829
    %v831 = vsel %vm721, %v713, -inf
    %v832 = vsel %vm723, %v714, -inf
    %v833 = vmax.f32 %v831, %v832
    %v834 = vrot.slane %v833, 4
    %v835 = vmax.f32 %v833, %v834
    %v836 = vrot.slane %v835, 2
    %v837 = vmax.f32 %v835, %v836
    %v838 = vrot.slane %v837, 1
    %v839 = vmax.f32 %v837, %v838
    %v840 = vsel %vm721, %v715, -inf
    %v841 = vsel %vm723, %v716, -inf
    %v842 = vmax.f32 %v840, %v841
    %v843 = vrot.slane %v842, 4
    %v844 = vmax.f32 %v842, %v843
    %v845 = vrot.slane %v844, 2
    %v846 = vmax.f32 %v844, %v845
    %v847 = vrot.slane %v846, 1
    %v848 = vmax.f32 %v846, %v847
    %v849 = vsel %vm721, %v717, -inf
    %v850 = vsel %vm723, %v718, -inf
    %v851 = vmax.f32 %v849, %v850
    %v852 = vrot.slane %v851, 4
    %v853 = vmax.f32 %v851, %v852
    %v854 = vrot.slane %v853, 2
    %v855 = vmax.f32 %v853, %v854
    %v856 = vrot.slane %v855, 1
    %v857 = vmax.f32 %v855, %v856
    %v858 = vsel %vm721, %v719, -inf
    %v859 = vsel %vm723, %v720, -inf
    %v860 = vmax.f32 %v858, %v859
    %v861 = vrot.slane %v860, 4
    %v862 = vmax.f32 %v860, %v861
    %v863 = vrot.slane %v862, 2
    %v864 = vmax.f32 %v862, %v863
    %v865 = vrot.slane %v864, 1
    %v866 = vmax.f32 %v864, %v865
    %vm867 = vcmask 1044480
    %v868 = vrot.slane %v256, 3
    %v869 = vrot.slane %v258, 3
    %v870 = vsel %vm867, %v868, %v869
    %v871 = vrot.slane %v261, 3
    %v872 = vrot.slane %v263, 3
    %v873 = vsel %vm867, %v871, %v872
    %v874 = vrot.slane %v266, 3
    %v875 = vrot.slane %v268, 3
    %v876 = vsel %vm867, %v874, %v875
    %v877 = vrot.slane %v271, 3
    %v878 = vrot.slane %v273, 3
    %v879 = vsel %vm867, %v877, %v878
    %v880 = vrot.slane %v276, 3
    %v881 = vrot.slane %v278, 3
    %v882 = vsel %vm867, %v880, %v881
    %v883 = vrot.slane %v281, 3
    %v884 = vrot.slane %v283, 3
    %v885 = vsel %vm867, %v883, %v884
    %v886 = vrot.slane %v286, 3
    %v887 = vrot.slane %v288, 3
    %v888 = vsel %vm867, %v886, %v887
    %v889 = vrot.slane %v291, 3
    %v890 = vrot.slane %v293, 3
    %v891 = vsel %vm867, %v889, %v890
    %v892 = vrot.slane %v296, 3
    %v893 = vrot.slane %v298, 3
    %v894 = vsel %vm867, %v892, %v893
    %v895 = vrot.slane %v301, 3
    %v896 = vrot.slane %v303, 3
    %v897 = vsel %vm867, %v895, %v896
    %v898 = vrot.slane %v306, 3
    %v899 = vrot.slane %v308, 3
    %v900 = vsel %vm867, %v898, %v899
    %v901 = vrot.slane %v311, 3
    %v902 = vrot.slane %v313, 3
    %v903 = vsel %vm867, %v901, %v902
    %v904 = vrot.slane %v316, 3
    %v905 = vrot.slane %v318, 3
    %v906 = vsel %vm867, %v904, %v905
    %v907 = vrot.slane %v321, 3
    %v908 = vrot.slane %v323, 3
    %v909 = vsel %vm867, %v907, %v908
    %v910 = vrot.slane %v326, 3
    %v911 = vrot.slane %v328, 3
    %v912 = vsel %vm867, %v910, %v911
    %v913 = vrot.slane %v331, 3
    %v914 = vrot.slane %v333, 3
    %v915 = vsel %vm867, %v913, %v914
    %916 = vrot.lane.b32.xlu0 %v870, 104
    %v917 = vpop.permute.xlu0 %916
    %918 = vrot.lane.b32.xlu0 %v869, 104
    %v919 = vpop.permute.xlu0 %918
    %920 = vrot.lane.b32.xlu0 %v873, 104
    %v921 = vpop.permute.xlu0 %920
    %922 = vrot.lane.b32.xlu0 %v872, 104
    %v923 = vpop.permute.xlu0 %922
    %924 = vrot.lane.b32.xlu0 %v876, 104
    %v925 = vpop.permute.xlu0 %924
    %926 = vrot.lane.b32.xlu0 %v875, 104
    %v927 = vpop.permute.xlu0 %926
    %928 = vrot.lane.b32.xlu0 %v879, 104
    %v929 = vpop.permute.xlu0 %928
    %930 = vrot.lane.b32.xlu0 %v878, 104
    %v931 = vpop.permute.xlu0 %930
    %932 = vrot.lane.b32.xlu0 %v882, 104
    %v933 = vpop.permute.xlu0 %932
    %934 = vrot.lane.b32.xlu0 %v881, 104
    %v935 = vpop.permute.xlu0 %934
    %936 = vrot.lane.b32.xlu0 %v885, 104
    %v937 = vpop.permute.xlu0 %936
    %938 = vrot.lane.b32.xlu0 %v884, 104
    %v939 = vpop.permute.xlu0 %938
    %940 = vrot.lane.b32.xlu0 %v888, 104
    %v941 = vpop.permute.xlu0 %940
    %942 = vrot.lane.b32.xlu0 %v887, 104
    %v943 = vpop.permute.xlu0 %942
    %944 = vrot.lane.b32.xlu0 %v891, 104
    %v945 = vpop.permute.xlu0 %944
    %946 = vrot.lane.b32.xlu0 %v890, 104
    %v947 = vpop.permute.xlu0 %946
    %948 = vrot.lane.b32.xlu0 %v894, 104
    %v949 = vpop.permute.xlu0 %948
    %950 = vrot.lane.b32.xlu0 %v893, 104
    %v951 = vpop.permute.xlu0 %950
    %952 = vrot.lane.b32.xlu0 %v897, 104
    %v953 = vpop.permute.xlu0 %952
    %954 = vrot.lane.b32.xlu0 %v896, 104
    %v955 = vpop.permute.xlu0 %954
    %956 = vrot.lane.b32.xlu0 %v900, 104
    %v957 = vpop.permute.xlu0 %956
    %958 = vrot.lane.b32.xlu0 %v899, 104
    %v959 = vpop.permute.xlu0 %958
    %960 = vrot.lane.b32.xlu0 %v903, 104
    %v961 = vpop.permute.xlu0 %960
    %962 = vrot.lane.b32.xlu0 %v902, 104
    %v963 = vpop.permute.xlu0 %962
    %964 = vrot.lane.b32.xlu0 %v906, 104
    %v965 = vpop.permute.xlu0 %964
    %966 = vrot.lane.b32.xlu0 %v905, 104
    %v967 = vpop.permute.xlu0 %966
    %968 = vrot.lane.b32.xlu0 %v909, 104
    %v969 = vpop.permute.xlu0 %968
    %970 = vrot.lane.b32.xlu0 %v908, 104
    %v971 = vpop.permute.xlu0 %970
    %972 = vrot.lane.b32.xlu0 %v912, 104
    %v973 = vpop.permute.xlu0 %972
    %974 = vrot.lane.b32.xlu0 %v911, 104
    %v975 = vpop.permute.xlu0 %974
    %976 = vrot.lane.b32.xlu0 %v915, 104
    %v977 = vpop.permute.xlu0 %976
    %978 = vrot.lane.b32.xlu0 %v914, 104
    %v979 = vpop.permute.xlu0 %978
    %v1012 = vadd.f32 %v689, %v917
    %v1013 = vadd.f32 %v690, %v919
    %v1014 = vadd.f32 %v691, %v921
    %v1015 = vadd.f32 %v692, %v923
    %v1016 = vadd.f32 %v693, %v925
    %v1017 = vadd.f32 %v694, %v927
    %v1018 = vadd.f32 %v695, %v929
    %v1019 = vadd.f32 %v696, %v931
    %v1020 = vadd.f32 %v697, %v933
    %v1021 = vadd.f32 %v698, %v935
    %v1022 = vadd.f32 %v699, %v937
    %v1023 = vadd.f32 %v700, %v939
    %v1024 = vadd.f32 %v701, %v941
    %v1025 = vadd.f32 %v702, %v943
    %v1026 = vadd.f32 %v703, %v945
    %v1027 = vadd.f32 %v704, %v947
    %v1028 = vadd.f32 %v705, %v949
    %v1029 = vadd.f32 %v706, %v951
    %v1030 = vadd.f32 %v707, %v953
    %v1031 = vadd.f32 %v708, %v955
    %v1032 = vadd.f32 %v709, %v957
    %v1033 = vadd.f32 %v710, %v959
    %v1034 = vadd.f32 %v711, %v961
    %v1035 = vadd.f32 %v712, %v963
    %v1036 = vadd.f32 %v713, %v965
    %v1037 = vadd.f32 %v714, %v967
    %v1038 = vadd.f32 %v715, %v969
    %v1039 = vadd.f32 %v716, %v971
    %v1040 = vadd.f32 %v717, %v973
    %v1041 = vadd.f32 %v718, %v975
    %v1042 = vadd.f32 %v719, %v977
    %v1043 = vadd.f32 %v720, %v979
    %vm1044 = vcmask 261312
    %v1045 = vsel %vm1044, %v1012, -inf
    %vm1046 = vcmask 258240
    %v1047 = vsel %vm1046, %v1013, -inf
    %v1048 = vmax.f32 %v1045, %v1047
    %v1049 = vrot.slane %v1048, 4
    %v1050 = vmax.f32 %v1048, %v1049
    %v1051 = vrot.slane %v1050, 2
    %v1052 = vmax.f32 %v1050, %v1051
    %v1053 = vrot.slane %v1052, 1
    %v1054 = vmax.f32 %v1052, %v1053
    %v1055 = vsel %vm1044, %v1014, -inf
    %v1056 = vsel %vm1046, %v1015, -inf
    %v1057 = vmax.f32 %v1055, %v1056
    %v1058 = vrot.slane %v1057, 4
    %v1059 = vmax.f32 %v1057, %v1058
    %v1060 = vrot.slane %v1059, 2
    %v1061 = vmax.f32 %v1059, %v1060
    %v1062 = vrot.slane %v1061, 1
    %v1063 = vmax.f32 %v1061, %v1062
    %v1064 = vsel %vm1044, %v1016, -inf
    %v1065 = vsel %vm1046, %v1017, -inf
    %v1066 = vmax.f32 %v1064, %v1065
    %v1067 = vrot.slane %v1066, 4
    %v1068 = vmax.f32 %v1066, %v1067
    %v1069 = vrot.slane %v1068, 2
    %v1070 = vmax.f32 %v1068, %v1069
    %v1071 = vrot.slane %v1070, 1
    %v1072 = vmax.f32 %v1070, %v1071
    %v1073 = vsel %vm1044, %v1018, -inf
    %v1074 = vsel %vm1046, %v1019, -inf
    %v1075 = vmax.f32 %v1073, %v1074
    %v1076 = vrot.slane %v1075, 4
    %v1077 = vmax.f32 %v1075, %v1076
    %v1078 = vrot.slane %v1077, 2
    %v1079 = vmax.f32 %v1077, %v1078
    %v1080 = vrot.slane %v1079, 1
    %v1081 = vmax.f32 %v1079, %v1080
    %v1082 = vsel %vm1044, %v1020, -inf
    %v1083 = vsel %vm1046, %v1021, -inf
    %v1084 = vmax.f32 %v1082, %v1083
    %v1085 = vrot.slane %v1084, 4
    %v1086 = vmax.f32 %v1084, %v1085
    %v1087 = vrot.slane %v1086, 2
    %v1088 = vmax.f32 %v1086, %v1087
    %v1089 = vrot.slane %v1088, 1
    %v1090 = vmax.f32 %v1088, %v1089
    %v1091 = vsel %vm1044, %v1022, -inf
    %v1092 = vsel %vm1046, %v1023, -inf
    %v1093 = vmax.f32 %v1091, %v1092
    %v1094 = vrot.slane %v1093, 4
    %v1095 = vmax.f32 %v1093, %v1094
    %v1096 = vrot.slane %v1095, 2
    %v1097 = vmax.f32 %v1095, %v1096
    %v1098 = vrot.slane %v1097, 1
    %v1099 = vmax.f32 %v1097, %v1098
    %v1100 = vsel %vm1044, %v1024, -inf
    %v1101 = vsel %vm1046, %v1025, -inf
    %v1102 = vmax.f32 %v1100, %v1101
    %v1103 = vrot.slane %v1102, 4
    %v1104 = vmax.f32 %v1102, %v1103
    %v1105 = vrot.slane %v1104, 2
    %v1106 = vmax.f32 %v1104, %v1105
    %v1107 = vrot.slane %v1106, 1
    %v1108 = vmax.f32 %v1106, %v1107
    %v1109 = vsel %vm1044, %v1026, -inf
    %v1110 = vsel %vm1046, %v1027, -inf
    %v1111 = vmax.f32 %v1109, %v1110
    %v1112 = vrot.slane %v1111, 4
    %v1113 = vmax.f32 %v1111, %v1112
    %v1114 = vrot.slane %v1113, 2
    %v1115 = vmax.f32 %v1113, %v1114
    %v1116 = vrot.slane %v1115, 1
    %v1117 = vmax.f32 %v1115, %v1116
    %v1118 = vsel %vm1044, %v1028, -inf
    %v1119 = vsel %vm1046, %v1029, -inf
    %v1120 = vmax.f32 %v1118, %v1119
    %v1121 = vrot.slane %v1120, 4
    %v1122 = vmax.f32 %v1120, %v1121
    %v1123 = vrot.slane %v1122, 2
    %v1124 = vmax.f32 %v1122, %v1123
    %v1125 = vrot.slane %v1124, 1
    %v1126 = vmax.f32 %v1124, %v1125
    %v1127 = vsel %vm1044, %v1030, -inf
    %v1128 = vsel %vm1046, %v1031, -inf
    %v1129 = vmax.f32 %v1127, %v1128
    %v1130 = vrot.slane %v1129, 4
    %v1131 = vmax.f32 %v1129, %v1130
    %v1132 = vrot.slane %v1131, 2
    %v1133 = vmax.f32 %v1131, %v1132
    %v1134 = vrot.slane %v1133, 1
    %v1135 = vmax.f32 %v1133, %v1134
    %v1136 = vsel %vm1044, %v1032, -inf
    %v1137 = vsel %vm1046, %v1033, -inf
    %v1138 = vmax.f32 %v1136, %v1137
    %v1139 = vrot.slane %v1138, 4
    %v1140 = vmax.f32 %v1138, %v1139
    %v1141 = vrot.slane %v1140, 2
    %v1142 = vmax.f32 %v1140, %v1141
    %v1143 = vrot.slane %v1142, 1
    %v1144 = vmax.f32 %v1142, %v1143
    %v1145 = vsel %vm1044, %v1034, -inf
    %v1146 = vsel %vm1046, %v1035, -inf
    %v1147 = vmax.f32 %v1145, %v1146
    %v1148 = vrot.slane %v1147, 4
    %v1149 = vmax.f32 %v1147, %v1148
    %v1150 = vrot.slane %v1149, 2
    %v1151 = vmax.f32 %v1149, %v1150
    %v1152 = vrot.slane %v1151, 1
    %v1153 = vmax.f32 %v1151, %v1152
    %v1154 = vsel %vm1044, %v1036, -inf
    %v1155 = vsel %vm1046, %v1037, -inf
    %v1156 = vmax.f32 %v1154, %v1155
    %v1157 = vrot.slane %v1156, 4
    %v1158 = vmax.f32 %v1156, %v1157
    %v1159 = vrot.slane %v1158, 2
    %v1160 = vmax.f32 %v1158, %v1159
    %v1161 = vrot.slane %v1160, 1
    %v1162 = vmax.f32 %v1160, %v1161
    %v1163 = vsel %vm1044, %v1038, -inf
    %v1164 = vsel %vm1046, %v1039, -inf
    %v1165 = vmax.f32 %v1163, %v1164
    %v1166 = vrot.slane %v1165, 4
    %v1167 = vmax.f32 %v1165, %v1166
    %v1168 = vrot.slane %v1167, 2
    %v1169 = vmax.f32 %v1167, %v1168
    %v1170 = vrot.slane %v1169, 1
    %v1171 = vmax.f32 %v1169, %v1170
    %v1172 = vsel %vm1044, %v1040, -inf
    %v1173 = vsel %vm1046, %v1041, -inf
    %v1174 = vmax.f32 %v1172, %v1173
    %v1175 = vrot.slane %v1174, 4
    %v1176 = vmax.f32 %v1174, %v1175
    %v1177 = vrot.slane %v1176, 2
    %v1178 = vmax.f32 %v1176, %v1177
    %v1179 = vrot.slane %v1178, 1
    %v1180 = vmax.f32 %v1178, %v1179
    %v1181 = vsel %vm1044, %v1042, -inf
    %v1182 = vsel %vm1046, %v1043, -inf
    %v1183 = vmax.f32 %v1181, %v1182
    %v1184 = vrot.slane %v1183, 4
    %v1185 = vmax.f32 %v1183, %v1184
    %v1186 = vrot.slane %v1185, 2
    %v1187 = vmax.f32 %v1185, %v1186
    %v1188 = vrot.slane %v1187, 1
    %v1189 = vmax.f32 %v1187, %v1188
    %vm1190 = vcmask 1043456
    %v1191 = vrot.slane %v256, 4
    %v1192 = vrot.slane %v258, 4
    %v1193 = vsel %vm1190, %v1191, %v1192
    %v1194 = vrot.slane %v261, 4
    %v1195 = vrot.slane %v263, 4
    %v1196 = vsel %vm1190, %v1194, %v1195
    %v1197 = vrot.slane %v266, 4
    %v1198 = vrot.slane %v268, 4
    %v1199 = vsel %vm1190, %v1197, %v1198
    %v1200 = vrot.slane %v271, 4
    %v1201 = vrot.slane %v273, 4
    %v1202 = vsel %vm1190, %v1200, %v1201
    %v1203 = vrot.slane %v276, 4
    %v1204 = vrot.slane %v278, 4
    %v1205 = vsel %vm1190, %v1203, %v1204
    %v1206 = vrot.slane %v281, 4
    %v1207 = vrot.slane %v283, 4
    %v1208 = vsel %vm1190, %v1206, %v1207
    %v1209 = vrot.slane %v286, 4
    %v1210 = vrot.slane %v288, 4
    %v1211 = vsel %vm1190, %v1209, %v1210
    %v1212 = vrot.slane %v291, 4
    %v1213 = vrot.slane %v293, 4
    %v1214 = vsel %vm1190, %v1212, %v1213
    %v1215 = vrot.slane %v296, 4
    %v1216 = vrot.slane %v298, 4
    %v1217 = vsel %vm1190, %v1215, %v1216
    %v1218 = vrot.slane %v301, 4
    %v1219 = vrot.slane %v303, 4
    %v1220 = vsel %vm1190, %v1218, %v1219
    %v1221 = vrot.slane %v306, 4
    %v1222 = vrot.slane %v308, 4
    %v1223 = vsel %vm1190, %v1221, %v1222
    %v1224 = vrot.slane %v311, 4
    %v1225 = vrot.slane %v313, 4
    %v1226 = vsel %vm1190, %v1224, %v1225
    %v1227 = vrot.slane %v316, 4
    %v1228 = vrot.slane %v318, 4
    %v1229 = vsel %vm1190, %v1227, %v1228
    %v1230 = vrot.slane %v321, 4
    %v1231 = vrot.slane %v323, 4
    %v1232 = vsel %vm1190, %v1230, %v1231
    %v1233 = vrot.slane %v326, 4
    %v1234 = vrot.slane %v328, 4
    %v1235 = vsel %vm1190, %v1233, %v1234
    %v1236 = vrot.slane %v331, 4
    %v1237 = vrot.slane %v333, 4
    %v1238 = vsel %vm1190, %v1236, %v1237
    %1239 = vrot.lane.b32.xlu0 %v1193, 96
    %v1240 = vpop.permute.xlu0 %1239
    %1241 = vrot.lane.b32.xlu0 %v1192, 96
    %v1242 = vpop.permute.xlu0 %1241
    %1243 = vrot.lane.b32.xlu0 %v1196, 96
    %v1244 = vpop.permute.xlu0 %1243
    %1245 = vrot.lane.b32.xlu0 %v1195, 96
    %v1246 = vpop.permute.xlu0 %1245
    %1247 = vrot.lane.b32.xlu0 %v1199, 96
    %v1248 = vpop.permute.xlu0 %1247
    %1249 = vrot.lane.b32.xlu0 %v1198, 96
    %v1250 = vpop.permute.xlu0 %1249
    %1251 = vrot.lane.b32.xlu0 %v1202, 96
    %v1252 = vpop.permute.xlu0 %1251
    %1253 = vrot.lane.b32.xlu0 %v1201, 96
    %v1254 = vpop.permute.xlu0 %1253
    %1255 = vrot.lane.b32.xlu0 %v1205, 96
    %v1256 = vpop.permute.xlu0 %1255
    %1257 = vrot.lane.b32.xlu0 %v1204, 96
    %v1258 = vpop.permute.xlu0 %1257
    %1259 = vrot.lane.b32.xlu0 %v1208, 96
    %v1260 = vpop.permute.xlu0 %1259
    %1261 = vrot.lane.b32.xlu0 %v1207, 96
    %v1262 = vpop.permute.xlu0 %1261
    %1263 = vrot.lane.b32.xlu0 %v1211, 96
    %v1264 = vpop.permute.xlu0 %1263
    %1265 = vrot.lane.b32.xlu0 %v1210, 96
    %v1266 = vpop.permute.xlu0 %1265
    %1267 = vrot.lane.b32.xlu0 %v1214, 96
    %v1268 = vpop.permute.xlu0 %1267
    %1269 = vrot.lane.b32.xlu0 %v1213, 96
    %v1270 = vpop.permute.xlu0 %1269
    %1271 = vrot.lane.b32.xlu0 %v1217, 96
    %v1272 = vpop.permute.xlu0 %1271
    %1273 = vrot.lane.b32.xlu0 %v1216, 96
    %v1274 = vpop.permute.xlu0 %1273
    %1275 = vrot.lane.b32.xlu0 %v1220, 96
    %v1276 = vpop.permute.xlu0 %1275
    %1277 = vrot.lane.b32.xlu0 %v1219, 96
    %v1278 = vpop.permute.xlu0 %1277
    %1279 = vrot.lane.b32.xlu0 %v1223, 96
    %v1280 = vpop.permute.xlu0 %1279
    %1281 = vrot.lane.b32.xlu0 %v1222, 96
    %v1282 = vpop.permute.xlu0 %1281
    %1283 = vrot.lane.b32.xlu0 %v1226, 96
    %v1284 = vpop.permute.xlu0 %1283
    %1285 = vrot.lane.b32.xlu0 %v1225, 96
    %v1286 = vpop.permute.xlu0 %1285
    %1287 = vrot.lane.b32.xlu0 %v1229, 96
    %v1288 = vpop.permute.xlu0 %1287
    %1289 = vrot.lane.b32.xlu0 %v1228, 96
    %v1290 = vpop.permute.xlu0 %1289
    %1291 = vrot.lane.b32.xlu0 %v1232, 96
    %v1292 = vpop.permute.xlu0 %1291
    %1293 = vrot.lane.b32.xlu0 %v1231, 96
    %v1294 = vpop.permute.xlu0 %1293
    %1295 = vrot.lane.b32.xlu0 %v1235, 96
    %v1296 = vpop.permute.xlu0 %1295
    %1297 = vrot.lane.b32.xlu0 %v1234, 96
    %v1298 = vpop.permute.xlu0 %1297
    %1299 = vrot.lane.b32.xlu0 %v1238, 96
    %v1300 = vpop.permute.xlu0 %1299
    %1301 = vrot.lane.b32.xlu0 %v1237, 96
    %v1302 = vpop.permute.xlu0 %1301
    %v1335 = vadd.f32 %v1012, %v1240
    %v1336 = vadd.f32 %v1013, %v1242
    %v1337 = vadd.f32 %v1014, %v1244
    %v1338 = vadd.f32 %v1015, %v1246
    %v1339 = vadd.f32 %v1016, %v1248
    %v1340 = vadd.f32 %v1017, %v1250
    %v1341 = vadd.f32 %v1018, %v1252
    %v1342 = vadd.f32 %v1019, %v1254
    %v1343 = vadd.f32 %v1020, %v1256
    %v1344 = vadd.f32 %v1021, %v1258
    %v1345 = vadd.f32 %v1022, %v1260
    %v1346 = vadd.f32 %v1023, %v1262
    %v1347 = vadd.f32 %v1024, %v1264
    %v1348 = vadd.f32 %v1025, %v1266
    %v1349 = vadd.f32 %v1026, %v1268
    %v1350 = vadd.f32 %v1027, %v1270
    %v1351 = vadd.f32 %v1028, %v1272
    %v1352 = vadd.f32 %v1029, %v1274
    %v1353 = vadd.f32 %v1030, %v1276
    %v1354 = vadd.f32 %v1031, %v1278
    %v1355 = vadd.f32 %v1032, %v1280
    %v1356 = vadd.f32 %v1033, %v1282
    %v1357 = vadd.f32 %v1034, %v1284
    %v1358 = vadd.f32 %v1035, %v1286
    %v1359 = vadd.f32 %v1036, %v1288
    %v1360 = vadd.f32 %v1037, %v1290
    %v1361 = vadd.f32 %v1038, %v1292
    %v1362 = vadd.f32 %v1039, %v1294
    %v1363 = vadd.f32 %v1040, %v1296
    %v1364 = vadd.f32 %v1041, %v1298
    %v1365 = vadd.f32 %v1042, %v1300
    %v1366 = vadd.f32 %v1043, %v1302
    %vm1367 = vcmask 523712
    %v1368 = vsel %vm1367, %v1335, -inf
    %vm1369 = vcmask 519616
    %v1370 = vsel %vm1369, %v1336, -inf
    %v1371 = vmax.f32 %v1368, %v1370
    %v1372 = vrot.slane %v1371, 4
    %v1373 = vmax.f32 %v1371, %v1372
    %v1374 = vrot.slane %v1373, 2
    %v1375 = vmax.f32 %v1373, %v1374
    %v1376 = vrot.slane %v1375, 1
    %v1377 = vmax.f32 %v1375, %v1376
    %v1378 = vsel %vm1367, %v1337, -inf
    %v1379 = vsel %vm1369, %v1338, -inf
    %v1380 = vmax.f32 %v1378, %v1379
    %v1381 = vrot.slane %v1380, 4
    %v1382 = vmax.f32 %v1380, %v1381
    %v1383 = vrot.slane %v1382, 2
    %v1384 = vmax.f32 %v1382, %v1383
    %v1385 = vrot.slane %v1384, 1
    %v1386 = vmax.f32 %v1384, %v1385
    %v1387 = vsel %vm1367, %v1339, -inf
    %v1388 = vsel %vm1369, %v1340, -inf
    %v1389 = vmax.f32 %v1387, %v1388
    %v1390 = vrot.slane %v1389, 4
    %v1391 = vmax.f32 %v1389, %v1390
    %v1392 = vrot.slane %v1391, 2
    %v1393 = vmax.f32 %v1391, %v1392
    %v1394 = vrot.slane %v1393, 1
    %v1395 = vmax.f32 %v1393, %v1394
    %v1396 = vsel %vm1367, %v1341, -inf
    %v1397 = vsel %vm1369, %v1342, -inf
    %v1398 = vmax.f32 %v1396, %v1397
    %v1399 = vrot.slane %v1398, 4
    %v1400 = vmax.f32 %v1398, %v1399
    %v1401 = vrot.slane %v1400, 2
    %v1402 = vmax.f32 %v1400, %v1401
    %v1403 = vrot.slane %v1402, 1
    %v1404 = vmax.f32 %v1402, %v1403
    %v1405 = vsel %vm1367, %v1343, -inf
    %v1406 = vsel %vm1369, %v1344, -inf
    %v1407 = vmax.f32 %v1405, %v1406
    %v1408 = vrot.slane %v1407, 4
    %v1409 = vmax.f32 %v1407, %v1408
    %v1410 = vrot.slane %v1409, 2
    %v1411 = vmax.f32 %v1409, %v1410
    %v1412 = vrot.slane %v1411, 1
    %v1413 = vmax.f32 %v1411, %v1412
    %v1414 = vsel %vm1367, %v1345, -inf
    %v1415 = vsel %vm1369, %v1346, -inf
    %v1416 = vmax.f32 %v1414, %v1415
    %v1417 = vrot.slane %v1416, 4
    %v1418 = vmax.f32 %v1416, %v1417
    %v1419 = vrot.slane %v1418, 2
    %v1420 = vmax.f32 %v1418, %v1419
    %v1421 = vrot.slane %v1420, 1
    %v1422 = vmax.f32 %v1420, %v1421
    %v1423 = vsel %vm1367, %v1347, -inf
    %v1424 = vsel %vm1369, %v1348, -inf
    %v1425 = vmax.f32 %v1423, %v1424
    %v1426 = vrot.slane %v1425, 4
    %v1427 = vmax.f32 %v1425, %v1426
    %v1428 = vrot.slane %v1427, 2
    %v1429 = vmax.f32 %v1427, %v1428
    %v1430 = vrot.slane %v1429, 1
    %v1431 = vmax.f32 %v1429, %v1430
    %v1432 = vsel %vm1367, %v1349, -inf
    %v1433 = vsel %vm1369, %v1350, -inf
    %v1434 = vmax.f32 %v1432, %v1433
    %v1435 = vrot.slane %v1434, 4
    %v1436 = vmax.f32 %v1434, %v1435
    %v1437 = vrot.slane %v1436, 2
    %v1438 = vmax.f32 %v1436, %v1437
    %v1439 = vrot.slane %v1438, 1
    %v1440 = vmax.f32 %v1438, %v1439
    %v1441 = vsel %vm1367, %v1351, -inf
    %v1442 = vsel %vm1369, %v1352, -inf
    %v1443 = vmax.f32 %v1441, %v1442
    %v1444 = vrot.slane %v1443, 4
    %v1445 = vmax.f32 %v1443, %v1444
    %v1446 = vrot.slane %v1445, 2
    %v1447 = vmax.f32 %v1445, %v1446
    %v1448 = vrot.slane %v1447, 1
    %v1449 = vmax.f32 %v1447, %v1448
    %v1450 = vsel %vm1367, %v1353, -inf
    %v1451 = vsel %vm1369, %v1354, -inf
    %v1452 = vmax.f32 %v1450, %v1451
    %v1453 = vrot.slane %v1452, 4
    %v1454 = vmax.f32 %v1452, %v1453
    %v1455 = vrot.slane %v1454, 2
    %v1456 = vmax.f32 %v1454, %v1455
    %v1457 = vrot.slane %v1456, 1
    %v1458 = vmax.f32 %v1456, %v1457
    %v1459 = vsel %vm1367, %v1355, -inf
    %v1460 = vsel %vm1369, %v1356, -inf
    %v1461 = vmax.f32 %v1459, %v1460
    %v1462 = vrot.slane %v1461, 4
    %v1463 = vmax.f32 %v1461, %v1462
    %v1464 = vrot.slane %v1463, 2
    %v1465 = vmax.f32 %v1463, %v1464
    %v1466 = vrot.slane %v1465, 1
    %v1467 = vmax.f32 %v1465, %v1466
    %v1468 = vsel %vm1367, %v1357, -inf
    %v1469 = vsel %vm1369, %v1358, -inf
    %v1470 = vmax.f32 %v1468, %v1469
    %v1471 = vrot.slane %v1470, 4
    %v1472 = vmax.f32 %v1470, %v1471
    %v1473 = vrot.slane %v1472, 2
    %v1474 = vmax.f32 %v1472, %v1473
    %v1475 = vrot.slane %v1474, 1
    %v1476 = vmax.f32 %v1474, %v1475
    %v1477 = vsel %vm1367, %v1359, -inf
    %v1478 = vsel %vm1369, %v1360, -inf
    %v1479 = vmax.f32 %v1477, %v1478
    %v1480 = vrot.slane %v1479, 4
    %v1481 = vmax.f32 %v1479, %v1480
    %v1482 = vrot.slane %v1481, 2
    %v1483 = vmax.f32 %v1481, %v1482
    %v1484 = vrot.slane %v1483, 1
    %v1485 = vmax.f32 %v1483, %v1484
    %v1486 = vsel %vm1367, %v1361, -inf
    %v1487 = vsel %vm1369, %v1362, -inf
    %v1488 = vmax.f32 %v1486, %v1487
    %v1489 = vrot.slane %v1488, 4
    %v1490 = vmax.f32 %v1488, %v1489
    %v1491 = vrot.slane %v1490, 2
    %v1492 = vmax.f32 %v1490, %v1491
    %v1493 = vrot.slane %v1492, 1
    %v1494 = vmax.f32 %v1492, %v1493
    %v1495 = vsel %vm1367, %v1363, -inf
    %v1496 = vsel %vm1369, %v1364, -inf
    %v1497 = vmax.f32 %v1495, %v1496
    %v1498 = vrot.slane %v1497, 4
    %v1499 = vmax.f32 %v1497, %v1498
    %v1500 = vrot.slane %v1499, 2
    %v1501 = vmax.f32 %v1499, %v1500
    %v1502 = vrot.slane %v1501, 1
    %v1503 = vmax.f32 %v1501, %v1502
    %v1504 = vsel %vm1367, %v1365, -inf
    %v1505 = vsel %vm1369, %v1366, -inf
    %v1506 = vmax.f32 %v1504, %v1505
    %v1507 = vrot.slane %v1506, 4
    %v1508 = vmax.f32 %v1506, %v1507
    %v1509 = vrot.slane %v1508, 2
    %v1510 = vmax.f32 %v1508, %v1509
    %v1511 = vrot.slane %v1510, 1
    %v1512 = vmax.f32 %v1510, %v1511
    %vm1529 = vcmask 1041409
    %v1530 = vsel %vm1529, %v740, %v731
    %vm1531 = vcmask 1042434
    %v1532 = vsel %vm1531, %v749, %v1530
    %vm1533 = vcmask 1043459
    %v1534 = vsel %vm1533, %v758, %v1532
    %vm1535 = vcmask 1044484
    %v1536 = vsel %vm1535, %v767, %v1534
    %vm1537 = vcmask 1045509
    %v1538 = vsel %vm1537, %v776, %v1536
    %vm1539 = vcmask 1046534
    %v1540 = vsel %vm1539, %v785, %v1538
    %vm1541 = vcmask 1047559
    %v1542 = vsel %vm1541, %v794, %v1540
    %v1543 = vsel %vm1529, %v812, %v803
    %v1544 = vsel %vm1531, %v821, %v1543
    %v1545 = vsel %vm1533, %v830, %v1544
    %v1546 = vsel %vm1535, %v839, %v1545
    %v1547 = vsel %vm1537, %v848, %v1546
    %v1548 = vsel %vm1539, %v857, %v1547
    %v1549 = vsel %vm1541, %v866, %v1548
    %v1568 = vsel %vm1529, %v1063, %v1054
    %v1569 = vsel %vm1531, %v1072, %v1568
    %v1570 = vsel %vm1533, %v1081, %v1569
    %v1571 = vsel %vm1535, %v1090, %v1570
    %v1572 = vsel %vm1537, %v1099, %v1571
    %v1573 = vsel %vm1539, %v1108, %v1572
    %v1574 = vsel %vm1541, %v1117, %v1573
    %v1575 = vsel %vm1529, %v1135, %v1126
    %v1576 = vsel %vm1531, %v1144, %v1575
    %v1577 = vsel %vm1533, %v1153, %v1576
    %v1578 = vsel %vm1535, %v1162, %v1577
    %v1579 = vsel %vm1537, %v1171, %v1578
    %v1580 = vsel %vm1539, %v1180, %v1579
    %v1581 = vsel %vm1541, %v1189, %v1580
    %1582 = vrot.lane.b32.xlu0 %v1574, 112
    %v1583 = vpop.permute.xlu0 %1582
    %1584 = vrot.lane.b32.xlu0 %v1581, 112
    %v1585 = vpop.permute.xlu0 %1584
    %v1604 = vsel %vm1529, %v1386, %v1377
    %v1605 = vsel %vm1531, %v1395, %v1604
    %v1606 = vsel %vm1533, %v1404, %v1605
    %v1607 = vsel %vm1535, %v1413, %v1606
    %v1608 = vsel %vm1537, %v1422, %v1607
    %v1609 = vsel %vm1539, %v1431, %v1608
    %v1610 = vsel %vm1541, %v1440, %v1609
    %v1611 = vsel %vm1529, %v1458, %v1449
    %v1612 = vsel %vm1531, %v1467, %v1611
    %v1613 = vsel %vm1533, %v1476, %v1612
    %v1614 = vsel %vm1535, %v1485, %v1613
    %v1615 = vsel %vm1537, %v1494, %v1614
    %v1616 = vsel %vm1539, %v1503, %v1615
    %v1617 = vsel %vm1541, %v1512, %v1616
    %1618 = vrot.lane.b32.xlu0 %v1610, 88
    %v1619 = vpop.permute.xlu0 %1618
    %1620 = vrot.lane.b32.xlu0 %v1617, 88
    %v1621 = vpop.permute.xlu0 %1620
    %v1624 = vsel %vm721, %v1542, %v1583
    %v1625 = vsel %vm721, %v1549, %v1585
    %vm1626 = vcmask 130048
    %v1627 = vsel %vm1626, %v1624, %v1619
    %v1628 = vsel %vm1626, %v1625, %v1621
    %v1629 = vld [vmem:[%s2] sm:$0x1]
    %v1631 = vperm.slane %v1629, 0
    %v1633 = vadd.f32 %v1627, %v1631
    %v1634 = vadd.f32 %v1628, %v1631
    %v1635 = vmax.f32 %v1633, 0.0
    %v1636 = vmax.f32 %v1634, 0.0
    %v1637 = vpack.c.bf16 %v1636, %v1635
    %v1638 = vld [vmem:[#allocation7] sm:$0xf]
    %v1639 = vld [vmem:[#allocation7 + $0x4] sm:$0xf]
    %v1640 = vld [vmem:[#allocation7 + $0x8] sm:$0xf]
    %v1641 = vld [vmem:[%s4] sm:$0x1]
    %v1643 = vperm.slane %v1641, 0
    %v1648 = vunpack.c.l.b16 %v1638
    %v1649 = vunpack.c.l.b16 %v1639
    %v1650 = vunpack.c.l.b16 %v1640
    %v1651 = vpack.c.b16 %v1649, %v1648
    %v1652 = vpack.c.b16 %v1650, %v1650
    %vm1654 = vcmask 195584
    %v1656 = vsel %vm1654, %v1637, 0
    %v1659 = vsel %vm1190, %v1652, 0
    %1661 = vmatpush.bf16.msra.mxu0 0
    %1662 = vmatpush.bf16.msra.mxu0 0
    %1663 = vmatpush.bf16.msra.mxu0 0
    %1664 = vmatpush.bf16.msra.mxu0 0
    %1665 = vmatpush.bf16.msra.mxu0 0
    %1666 = vmatpush.bf16.msra.mxu0 0
    %1667 = vmatpush.bf16.msra.mxu0 %v1659
    %1668 = vmatpush.bf16.msra.mxu0 %v1651
    %1669 = vmatmul.bf16.gmra.mxu0 %v1656
    %v1670 = vpop.f32.mrf.mxu0
    %v1671 = vadd.f32 %v1643, %v1670
    %v1672 = vpop.f32.mrf.mxu0
    %v1673 = vadd.f32 %v1643, %v1672
    %1674 = vdwg.mxu0
    %1675 = vst [vmem:[#allocation8] sm:$0xff] %v1671
    %1676 = vst [vmem:[#allocation8 + $0x8] sm:$0xff] %v1673
    // Predicated region
    $region34: #{tpu_custom_call.1} parent=1 // pred_check
      _
    $region35: #{tpu_custom_call.1} parent=1 // pred_check_branch
      %1678 = sbr.rel (0) target = $region37
    $region36: #{tpu_custom_call.1} parent=1 // pred_region
      %1680 = vsyncadd [#allocation4], 0
      %s1681 = sshll.u32 [#allocation8], 4
      %s1682 = int_to_ptr.vmem [resolvable:$true] %s1681
      %s1683 = sshll.u32 %s5, 4
      %s1684 = int_to_ptr.hbm [resolvable:$true] %s1683
      %1689 = dma.vmem_to_hbm [thread:$0]  %s1682, 256, %s1684, [#allocation4], 128, 128, 8
    $region37: #{tpu_custom_call.1} parent=1 // pred_fallthru
      _
    // Predicated region
    $region38: #{tpu_custom_call.1} parent=1 // pred_check
      _
    $region39: #{tpu_custom_call.1} parent=1 // pred_check_branch
      %1691 = sbr.rel (0) target = $region41
    $region40: #{tpu_custom_call.1} parent=1 // pred_region
      %1693 = dma.done [#allocation4], 256
    $region41: #{tpu_custom_call.1} parent=1 // pred_fallthru
      _
    %1694 = vsyncpa [#allocation3], 1
    %1695 = vsyncpa [#allocation6], 1
    %1696 = vsyncpa [#allocation4], 1

</llo_original>
